<compile_context>
chip_gen: v6e
topology: v6e:2x2x1
jax: 0.10.0
libtpu: 0.0.40
codegen_flags: <defaults>
</compile_context>

<pallas_src>
import functools

import jax
import jax.numpy as jnp
from jax.experimental import pallas as pl
from jax.experimental.pallas import tpu as pltpu


# Switch the fc0/fc1 matvecs onto the MXU once the per-layer GEMM is at least one
# native MXU tile's worth of work; below that the VPU broadcast form is cheaper.
_MXU_MIN_FC_ELEMS = 128 * 128


def _se_kernel_vpu(x_ref, w0t_ref, b0r_ref, w1_ref, b1c_ref, o_ref, *, inv_hw):
    """Per-batch VPU/XLU path: exact f32, column/row broadcasts only (small C*Hc)."""
    tb = x_ref.shape[0]                                    # static batch-tile size
    w0t = w0t_ref[...].astype(jnp.float32)                 # (C, Hc)
    b0r = b0r_ref[...].astype(jnp.float32)                 # (1, Hc)
    w1 = w1_ref[...].astype(jnp.float32)                   # (C, Hc)
    b1c = b1c_ref[...].astype(jnp.float32)                 # (C, 1)
    for b in range(tb):                                    # static unroll, tb <= 8
        xb = x_ref[b].astype(jnp.float32)                  # (C, HWp) f32 gate math
        # 1) global average pool (padded lanes are zero; inv_hw uses the true HW)
        mb = jnp.sum(xb, axis=1, keepdims=True) * inv_hw   # (C, 1)
        # 2) fc0: h[j] = sum_c w0[j, c] * m[c] + b0[j]  (sublane reduce -> row)
        hb = jnp.sum(w0t * mb, axis=0, keepdims=True) + b0r        # (1, Hc)
        hb = jnp.maximum(hb, 0.0)                                  # ReLU
        # 3) fc1: g[c] = sum_j w1[c, j] * h[j] + b1[c]  (lane reduce -> column)
        gb = jnp.sum(w1 * hb, axis=1, keepdims=True) + b1c         # (C, 1)
        # 4) gate: 2 * sigmoid(g) * x   (sigmoid/exp run on the EUP slot)
        sb = 2.0 * jax.nn.sigmoid(gb)                              # (C, 1)
        o_ref[b] = (xb * sb).astype(o_ref.dtype)


def _se_kernel_mxu(x_ref, w0t_ref, b0r_ref, w1t_ref, b1r_ref, o_ref, *, inv_hw):
    """Batched MXU path: stack pooled means into (TB, C) and run two small GEMMs."""
    x = x_ref[...].astype(jnp.float32)                     # (TB, C, HWp)
    m = jnp.sum(x, axis=2) * inv_hw                        # (TB, C) pooled means
    h = jnp.dot(m, w0t_ref[...].astype(jnp.float32),
                preferred_element_type=jnp.float32,
                precision=jax.lax.Precision.HIGHEST) + b0r_ref[...].astype(jnp.float32)
    h = jnp.maximum(h, 0.0)                                # (TB, Hc)
    g = jnp.dot(h, w1t_ref[...].astype(jnp.float32),
                preferred_element_type=jnp.float32,
                precision=jax.lax.Precision.HIGHEST) + b1r_ref[...].astype(jnp.float32)
    s = 2.0 * jax.nn.sigmoid(g)                            # (TB, C) gates
    o_ref[...] = (x * s[:, :, None]).astype(o_ref.dtype)


def _choose_batch_tile(n, c, hwp, itemsize, target_bytes, max_tb):
    """Pick how many batch elements each grid step processes."""
    per_batch = c * hwp * itemsize
    tb = max(1, int(target_bytes // per_batch))
    tb = min(tb, max_tb, n)
    if n >= 2:
        # Keep >= 2 grid steps so the "parallel" batch axis can shard across both
        # TensorCores on v7x.
        tb = min(tb, max(1, n // 2))
    while n % tb:                                          # avoid ragged trailing blocks
        tb -= 1
    return tb


def switchable_se_block(x, w0, b0, w1, b1, *,
                        target_block_bytes=2 * 1024 * 1024,
                        max_batch_tile=8):
    """SE block forward.

    x : (N, C, H, W)      -- NCHW activations
    w0: (Hc, C), b0: (Hc,) -- fc0 1x1 conv (weight[:, :, 0, 0] / bias)
    w1: (C, Hc), b1: (C,)  -- fc1 1x1 conv
    """
    N, C, H, W = x.shape
    Hc = w0.shape[0]
    assert w0.shape == (Hc, C) and w1.shape == (C, Hc)

    HW = H * W
    # Lane-dense output stores: pad the flattened spatial dim up to a multiple of 128.
    HWp = -(-HW // 128) * 128
    x2 = x.reshape(N, C, HW)
    if HWp != HW:
        x2 = jnp.pad(x2, ((0, 0), (0, 0), (0, HWp - HW)))

    itemsize = jnp.dtype(x.dtype).itemsize
    TB = _choose_batch_tile(N, C, HWp, itemsize, target_block_bytes, max_batch_tile)
    grid = (N // TB,)

    use_mxu = (C * Hc) >= _MXU_MIN_FC_ELEMS
    b0v = b0.reshape(-1)
    b1v = b1.reshape(-1)
    if use_mxu:
        kernel = functools.partial(_se_kernel_mxu, inv_hw=1.0 / HW)
        params = (jnp.transpose(w0), b0v.reshape(1, Hc),
                  jnp.transpose(w1), b1v.reshape(1, C))
    else:
        kernel = functools.partial(_se_kernel_vpu, inv_hw=1.0 / HW)
        params = (jnp.transpose(w0), b0v.reshape(1, Hc),
                  w1, b1v.reshape(C, 1))

    # Constant-index specs -> the (tiny) weights stay resident in VMEM across steps.
    param_specs = [pl.BlockSpec(p.shape, lambda n: (0, 0)) for p in params]

    out = pl.pallas_call(
        kernel,
        out_shape=jax.ShapeDtypeStruct((N, C, HWp), x.dtype),
        grid_spec=pltpu.PrefetchScalarGridSpec(
            num_scalar_prefetch=0,
            grid=grid,
            in_specs=[pl.BlockSpec((TB, C, HWp), lambda n: (n, 0, 0))] + param_specs,
            out_specs=pl.BlockSpec((TB, C, HWp), lambda n: (n, 0, 0)),
        ),
        compiler_params=pltpu.CompilerParams(
            dimension_semantics=("parallel",)),
        # Blocks are sized well under the scoped-VMEM defaults (16/32 MiB); raise
        # vmem_limit_bytes here if target_block_bytes is increased on 128 MiB parts.
    )(x2, *params)

    out = out[:, :, :HW].reshape(N, C, H, W)
    return out


def reference(x, w0, b0, w1, b1):
    """Pure-JAX reference of the PyTorch forward (width_mult = 1.0 path)."""
    hi = jax.lax.Precision.HIGHEST  # f32-exact so XLA's default bf16 dot passes
    m = jnp.mean(x, axis=(2, 3))                                          # (N, C)
    h = jnp.einsum("nc,hc->nh", m, w0, precision=hi) + b0[None, :]        # fc0
    h = jnp.maximum(h, 0.0)
    g = jnp.einsum("nh,ch->nc", h, w1, precision=hi) + b1[None, :]        # fc1
    s = 2.0 * jax.nn.sigmoid(g)
    return s[:, :, None, None] * x


if __name__ == "__main__":
    # Module config: width_mult = max(width_mult_list) = 1.0 -> full channel slices.
    in_channels_list = [16, 32, 48, 64]
    out_channels_list = [16, 32, 48, 64]
    se_ratio = 0.5
    C = in_channels_list[-1]                       # 64
    C_out = out_channels_list[-1]                  # 64 (must equal C for the gating)
    Hc = max(1, int(se_ratio * C))                 # 32
    N, H, W = 8, 16, 16                            # -> TB=4, grid=(2,) parallel steps

    key = jax.random.PRNGKey(0)
    kx, k0, kb0, k1, kb1 = jax.random.split(key, 5)
    x = jax.random.normal(kx, (N, C, H, W), dtype=jnp.float32)

    # 1x1 conv weights flattened to matrices, biases as vectors.
    w0 = jax.random.normal(k0, (Hc, C), dtype=jnp.float32) * 0.5      # fc0.weight[:, :, 0, 0]
    b0 = jax.random.normal(kb0, (Hc,), dtype=jnp.float32) * 0.1       # fc0.bias
    w1 = jax.random.normal(k1, (C_out, Hc), dtype=jnp.float32) * 0.5  # fc1.weight[:, :, 0, 0]
    b1 = jax.random.normal(kb1, (C_out,), dtype=jnp.float32) * 0.1    # fc1.bias

    y = jax.block_until_ready(switchable_se_block(x, w0, b0, w1, b1))

    y_ref = reference(x, w0, b0, w1, b1)
    assert y.shape == y_ref.shape
    assert jnp.allclose(y, y_ref, atol=1e-5, rtol=1e-5), "mismatch vs reference"

    print("KERNEL_OK")
</pallas_src>

<mosaic_0001>
module attributes {stable_mosaic.version = 11 : i64} {
  func.func @_se_kernel_vpu(%arg0: i32, %arg1: memref<4x64x256xf32, #tpu.memory_space<vmem>>, %arg2: memref<64x32xf32, #tpu.memory_space<vmem>>, %arg3: memref<1x32xf32, #tpu.memory_space<vmem>>, %arg4: memref<64x32xf32, #tpu.memory_space<vmem>>, %arg5: memref<64x1xf32, #tpu.memory_space<vmem>>, %arg6: memref<4x64x256xf32, #tpu.memory_space<vmem>>) attributes {dimension_semantics = [#tpu.dimension_semantics<parallel>], iteration_bounds = array<i64: 2>, scalar_prefetch = 0 : i64, scratch_operands = 0 : i64, tpu.core_type = #tpu.core_type<tc>, window_params = [{transform_indices = @transform_0, window_bounds = array<i64: 4, 64, 256>}, {pipeline_mode = #tpu.pipeline_mode<synchronous>, transform_indices = @transform_1, window_bounds = array<i64: 64, 32>}, {pipeline_mode = #tpu.pipeline_mode<synchronous>, transform_indices = @transform_2, window_bounds = array<i64: 1, 32>}, {pipeline_mode = #tpu.pipeline_mode<synchronous>, transform_indices = @transform_3, window_bounds = array<i64: 64, 32>}, {pipeline_mode = #tpu.pipeline_mode<synchronous>, transform_indices = @transform_4, window_bounds = array<i64: 64, 1>}, {transform_indices = @transform_5, window_bounds = array<i64: 4, 64, 256>}]} {
    %c0 = arith.constant 0 : index
    %c0_0 = arith.constant 0 : index
    %0 = vector.load %arg2[%c0, %c0_0] : memref<64x32xf32, #tpu.memory_space<vmem>>, vector<64x32xf32>
    %c0_1 = arith.constant 0 : index
    %c0_2 = arith.constant 0 : index
    %1 = vector.load %arg3[%c0_1, %c0_2] : memref<1x32xf32, #tpu.memory_space<vmem>>, vector<1x32xf32>
    %c0_3 = arith.constant 0 : index
    %c0_4 = arith.constant 0 : index
    %2 = vector.load %arg4[%c0_3, %c0_4] : memref<64x32xf32, #tpu.memory_space<vmem>>, vector<64x32xf32>
    %c0_5 = arith.constant 0 : index
    %c0_6 = arith.constant 0 : index
    %3 = vector.load %arg5[%c0_5, %c0_6] : memref<64x1xf32, #tpu.memory_space<vmem>>, vector<64x1xf32>
    %c0_7 = arith.constant 0 : index
    %c0_8 = arith.constant 0 : index
    %c0_9 = arith.constant 0 : index
    %4 = vector.load %arg1[%c0_7, %c0_8, %c0_9] : memref<4x64x256xf32, #tpu.memory_space<vmem>>, vector<1x64x256xf32>
    %5 = vector.shape_cast %4 : vector<1x64x256xf32> to vector<64x256xf32>
    %cst = arith.constant dense<0.000000e+00> : vector<64xf32>
    %6 = vector.multi_reduction <add>, %5, %cst [1] : vector<64x256xf32> to vector<64xf32>
    %7 = vector.shape_cast %6 : vector<64xf32> to vector<64x1xf32>
    %cst_10 = arith.constant 3.906250e-03 : f32
    %8 = vector.broadcast %cst_10 : f32 to vector<64x1xf32>
    %9 = arith.mulf %7, %8 : vector<64x1xf32>
    %10 = vector.broadcast %9 : vector<64x1xf32> to vector<64x32xf32>
    %11 = arith.mulf %0, %10 : vector<64x32xf32>
    %cst_11 = arith.constant dense<0.000000e+00> : vector<32xf32>
    %12 = vector.multi_reduction <add>, %11, %cst_11 [0] : vector<64x32xf32> to vector<32xf32>
    %13 = vector.shape_cast %12 : vector<32xf32> to vector<1x32xf32>
    %14 = arith.addf %13, %1 : vector<1x32xf32>
    %cst_12 = arith.constant 0.000000e+00 : f32
    %15 = vector.broadcast %cst_12 : f32 to vector<1x32xf32>
    %16 = arith.maximumf %14, %15 : vector<1x32xf32>
    %17 = vector.broadcast %16 : vector<1x32xf32> to vector<64x32xf32>
    %18 = arith.mulf %2, %17 : vector<64x32xf32>
    %cst_13 = arith.constant dense<0.000000e+00> : vector<64xf32>
    %19 = vector.multi_reduction <add>, %18, %cst_13 [1] : vector<64x32xf32> to vector<64xf32>
    %20 = vector.shape_cast %19 : vector<64xf32> to vector<64x1xf32>
    %21 = arith.addf %20, %3 : vector<64x1xf32>
    %22 = arith.negf %21 : vector<64x1xf32>
    %23 = math.exp %22 : vector<64x1xf32>
    %cst_14 = arith.constant 1.000000e+00 : f32
    %24 = vector.broadcast %cst_14 : f32 to vector<64x1xf32>
    %25 = arith.addf %24, %23 : vector<64x1xf32>
    %26 = arith.divf %24, %25 : vector<64x1xf32>
    %cst_15 = arith.constant 2.000000e+00 : f32
    %27 = vector.broadcast %cst_15 : f32 to vector<64x1xf32>
    %28 = arith.mulf %27, %26 : vector<64x1xf32>
    %29 = vector.broadcast %28 : vector<64x1xf32> to vector<64x256xf32>
    %30 = arith.mulf %5, %29 : vector<64x256xf32>
    %c0_16 = arith.constant 0 : index
    %c0_17 = arith.constant 0 : index
    %c0_18 = arith.constant 0 : index
    %31 = vector.load %arg6[%c0_16, %c0_17, %c0_18] : memref<4x64x256xf32, #tpu.memory_space<vmem>>, vector<1x64x256xf32>
    %32 = vector.shape_cast %31 : vector<1x64x256xf32> to vector<64x256xf32>
    %33 = vector.shape_cast %30 : vector<64x256xf32> to vector<1x64x256xf32>
    tpu.vector_store %arg6[%c0_16, %c0_17, %c0_18], %33 {strides = array<i32>} : memref<4x64x256xf32, #tpu.memory_space<vmem>>, vector<1x64x256xf32>,
    %c1 = arith.constant 1 : index
    %c0_19 = arith.constant 0 : index
    %c0_20 = arith.constant 0 : index
    %34 = vector.load %arg1[%c1, %c0_19, %c0_20] : memref<4x64x256xf32, #tpu.memory_space<vmem>>, vector<1x64x256xf32>
    %35 = vector.shape_cast %34 : vector<1x64x256xf32> to vector<64x256xf32>
    %cst_21 = arith.constant dense<0.000000e+00> : vector<64xf32>
    %36 = vector.multi_reduction <add>, %35, %cst_21 [1] : vector<64x256xf32> to vector<64xf32>
    %37 = vector.shape_cast %36 : vector<64xf32> to vector<64x1xf32>
    %cst_22 = arith.constant 3.906250e-03 : f32
    %38 = vector.broadcast %cst_22 : f32 to vector<64x1xf32>
    %39 = arith.mulf %37, %38 : vector<64x1xf32>
    %40 = vector.broadcast %39 : vector<64x1xf32> to vector<64x32xf32>
    %41 = arith.mulf %0, %40 : vector<64x32xf32>
    %cst_23 = arith.constant dense<0.000000e+00> : vector<32xf32>
    %42 = vector.multi_reduction <add>, %41, %cst_23 [0] : vector<64x32xf32> to vector<32xf32>
    %43 = vector.shape_cast %42 : vector<32xf32> to vector<1x32xf32>
    %44 = arith.addf %43, %1 : vector<1x32xf32>
    %cst_24 = arith.constant 0.000000e+00 : f32
    %45 = vector.broadcast %cst_24 : f32 to vector<1x32xf32>
    %46 = arith.maximumf %44, %45 : vector<1x32xf32>
    %47 = vector.broadcast %46 : vector<1x32xf32> to vector<64x32xf32>
    %48 = arith.mulf %2, %47 : vector<64x32xf32>
    %cst_25 = arith.constant dense<0.000000e+00> : vector<64xf32>
    %49 = vector.multi_reduction <add>, %48, %cst_25 [1] : vector<64x32xf32> to vector<64xf32>
    %50 = vector.shape_cast %49 : vector<64xf32> to vector<64x1xf32>
    %51 = arith.addf %50, %3 : vector<64x1xf32>
    %52 = arith.negf %51 : vector<64x1xf32>
    %53 = math.exp %52 : vector<64x1xf32>
    %cst_26 = arith.constant 1.000000e+00 : f32
    %54 = vector.broadcast %cst_26 : f32 to vector<64x1xf32>
    %55 = arith.addf %54, %53 : vector<64x1xf32>
    %56 = arith.divf %54, %55 : vector<64x1xf32>
    %cst_27 = arith.constant 2.000000e+00 : f32
    %57 = vector.broadcast %cst_27 : f32 to vector<64x1xf32>
    %58 = arith.mulf %57, %56 : vector<64x1xf32>
    %59 = vector.broadcast %58 : vector<64x1xf32> to vector<64x256xf32>
    %60 = arith.mulf %35, %59 : vector<64x256xf32>
    %c1_28 = arith.constant 1 : index
    %c0_29 = arith.constant 0 : index
    %c0_30 = arith.constant 0 : index
    %61 = vector.load %arg6[%c1_28, %c0_29, %c0_30] : memref<4x64x256xf32, #tpu.memory_space<vmem>>, vector<1x64x256xf32>
    %62 = vector.shape_cast %61 : vector<1x64x256xf32> to vector<64x256xf32>
    %63 = vector.shape_cast %60 : vector<64x256xf32> to vector<1x64x256xf32>
    tpu.vector_store %arg6[%c1_28, %c0_29, %c0_30], %63 {strides = array<i32>} : memref<4x64x256xf32, #tpu.memory_space<vmem>>, vector<1x64x256xf32>,
    %c2 = arith.constant 2 : index
    %c0_31 = arith.constant 0 : index
    %c0_32 = arith.constant 0 : index
    %64 = vector.load %arg1[%c2, %c0_31, %c0_32] : memref<4x64x256xf32, #tpu.memory_space<vmem>>, vector<1x64x256xf32>
    %65 = vector.shape_cast %64 : vector<1x64x256xf32> to vector<64x256xf32>
    %cst_33 = arith.constant dense<0.000000e+00> : vector<64xf32>
    %66 = vector.multi_reduction <add>, %65, %cst_33 [1] : vector<64x256xf32> to vector<64xf32>
    %67 = vector.shape_cast %66 : vector<64xf32> to vector<64x1xf32>
    %cst_34 = arith.constant 3.906250e-03 : f32
    %68 = vector.broadcast %cst_34 : f32 to vector<64x1xf32>
    %69 = arith.mulf %67, %68 : vector<64x1xf32>
    %70 = vector.broadcast %69 : vector<64x1xf32> to vector<64x32xf32>
    %71 = arith.mulf %0, %70 : vector<64x32xf32>
    %cst_35 = arith.constant dense<0.000000e+00> : vector<32xf32>
    %72 = vector.multi_reduction <add>, %71, %cst_35 [0] : vector<64x32xf32> to vector<32xf32>
    %73 = vector.shape_cast %72 : vector<32xf32> to vector<1x32xf32>
    %74 = arith.addf %73, %1 : vector<1x32xf32>
    %cst_36 = arith.constant 0.000000e+00 : f32
    %75 = vector.broadcast %cst_36 : f32 to vector<1x32xf32>
    %76 = arith.maximumf %74, %75 : vector<1x32xf32>
    %77 = vector.broadcast %76 : vector<1x32xf32> to vector<64x32xf32>
    %78 = arith.mulf %2, %77 : vector<64x32xf32>
    %cst_37 = arith.constant dense<0.000000e+00> : vector<64xf32>
    %79 = vector.multi_reduction <add>, %78, %cst_37 [1] : vector<64x32xf32> to vector<64xf32>
    %80 = vector.shape_cast %79 : vector<64xf32> to vector<64x1xf32>
    %81 = arith.addf %80, %3 : vector<64x1xf32>
    %82 = arith.negf %81 : vector<64x1xf32>
    %83 = math.exp %82 : vector<64x1xf32>
    %cst_38 = arith.constant 1.000000e+00 : f32
    %84 = vector.broadcast %cst_38 : f32 to vector<64x1xf32>
    %85 = arith.addf %84, %83 : vector<64x1xf32>
    %86 = arith.divf %84, %85 : vector<64x1xf32>
    %cst_39 = arith.constant 2.000000e+00 : f32
    %87 = vector.broadcast %cst_39 : f32 to vector<64x1xf32>
    %88 = arith.mulf %87, %86 : vector<64x1xf32>
    %89 = vector.broadcast %88 : vector<64x1xf32> to vector<64x256xf32>
    %90 = arith.mulf %65, %89 : vector<64x256xf32>
    %c2_40 = arith.constant 2 : index
    %c0_41 = arith.constant 0 : index
    %c0_42 = arith.constant 0 : index
    %91 = vector.load %arg6[%c2_40, %c0_41, %c0_42] : memref<4x64x256xf32, #tpu.memory_space<vmem>>, vector<1x64x256xf32>
    %92 = vector.shape_cast %91 : vector<1x64x256xf32> to vector<64x256xf32>
    %93 = vector.shape_cast %90 : vector<64x256xf32> to vector<1x64x256xf32>
    tpu.vector_store %arg6[%c2_40, %c0_41, %c0_42], %93 {strides = array<i32>} : memref<4x64x256xf32, #tpu.memory_space<vmem>>, vector<1x64x256xf32>,
    %c3 = arith.constant 3 : index
    %c0_43 = arith.constant 0 : index
    %c0_44 = arith.constant 0 : index
    %94 = vector.load %arg1[%c3, %c0_43, %c0_44] : memref<4x64x256xf32, #tpu.memory_space<vmem>>, vector<1x64x256xf32>
    %95 = vector.shape_cast %94 : vector<1x64x256xf32> to vector<64x256xf32>
    %cst_45 = arith.constant dense<0.000000e+00> : vector<64xf32>
    %96 = vector.multi_reduction <add>, %95, %cst_45 [1] : vector<64x256xf32> to vector<64xf32>
    %97 = vector.shape_cast %96 : vector<64xf32> to vector<64x1xf32>
    %cst_46 = arith.constant 3.906250e-03 : f32
    %98 = vector.broadcast %cst_46 : f32 to vector<64x1xf32>
    %99 = arith.mulf %97, %98 : vector<64x1xf32>
    %100 = vector.broadcast %99 : vector<64x1xf32> to vector<64x32xf32>
    %101 = arith.mulf %0, %100 : vector<64x32xf32>
    %cst_47 = arith.constant dense<0.000000e+00> : vector<32xf32>
    %102 = vector.multi_reduction <add>, %101, %cst_47 [0] : vector<64x32xf32> to vector<32xf32>
    %103 = vector.shape_cast %102 : vector<32xf32> to vector<1x32xf32>
    %104 = arith.addf %103, %1 : vector<1x32xf32>
    %cst_48 = arith.constant 0.000000e+00 : f32
    %105 = vector.broadcast %cst_48 : f32 to vector<1x32xf32>
    %106 = arith.maximumf %104, %105 : vector<1x32xf32>
    %107 = vector.broadcast %106 : vector<1x32xf32> to vector<64x32xf32>
    %108 = arith.mulf %2, %107 : vector<64x32xf32>
    %cst_49 = arith.constant dense<0.000000e+00> : vector<64xf32>
    %109 = vector.multi_reduction <add>, %108, %cst_49 [1] : vector<64x32xf32> to vector<64xf32>
    %110 = vector.shape_cast %109 : vector<64xf32> to vector<64x1xf32>
    %111 = arith.addf %110, %3 : vector<64x1xf32>
    %112 = arith.negf %111 : vector<64x1xf32>
    %113 = math.exp %112 : vector<64x1xf32>
    %cst_50 = arith.constant 1.000000e+00 : f32
    %114 = vector.broadcast %cst_50 : f32 to vector<64x1xf32>
    %115 = arith.addf %114, %113 : vector<64x1xf32>
    %116 = arith.divf %114, %115 : vector<64x1xf32>
    %cst_51 = arith.constant 2.000000e+00 : f32
    %117 = vector.broadcast %cst_51 : f32 to vector<64x1xf32>
    %118 = arith.mulf %117, %116 : vector<64x1xf32>
    %119 = vector.broadcast %118 : vector<64x1xf32> to vector<64x256xf32>
    %120 = arith.mulf %95, %119 : vector<64x256xf32>
    %c3_52 = arith.constant 3 : index
    %c0_53 = arith.constant 0 : index
    %c0_54 = arith.constant 0 : index
    %121 = vector.load %arg6[%c3_52, %c0_53, %c0_54] : memref<4x64x256xf32, #tpu.memory_space<vmem>>, vector<1x64x256xf32>
    %122 = vector.shape_cast %121 : vector<1x64x256xf32> to vector<64x256xf32>
    %123 = vector.shape_cast %120 : vector<64x256xf32> to vector<1x64x256xf32>
    tpu.vector_store %arg6[%c3_52, %c0_53, %c0_54], %123 {strides = array<i32>} : memref<4x64x256xf32, #tpu.memory_space<vmem>>, vector<1x64x256xf32>,
    return
  }
  func.func @transform_0(%arg0: i32) -> (i32, i32, i32) {
    %c0_i32 = arith.constant 0 : i32
    %c0_i32_0 = arith.constant 0 : i32
    %c0_i32_1 = arith.constant 0 : i32
    return %arg0, %c0_i32, %c0_i32_0 : i32, i32, i32
  }
  func.func @transform_1(%arg0: i32) -> (i32, i32) {
    %c0_i32 = arith.constant 0 : i32
    %c0_i32_0 = arith.constant 0 : i32
    %c0_i32_1 = arith.constant 0 : i32
    return %c0_i32, %c0_i32_0 : i32, i32
  }
  func.func @transform_2(%arg0: i32) -> (i32, i32) {
    %c0_i32 = arith.constant 0 : i32
    %c0_i32_0 = arith.constant 0 : i32
    %c0_i32_1 = arith.constant 0 : i32
    return %c0_i32, %c0_i32_0 : i32, i32
  }
  func.func @transform_3(%arg0: i32) -> (i32, i32) {
    %c0_i32 = arith.constant 0 : i32
    %c0_i32_0 = arith.constant 0 : i32
    %c0_i32_1 = arith.constant 0 : i32
    return %c0_i32, %c0_i32_0 : i32, i32
  }
  func.func @transform_4(%arg0: i32) -> (i32, i32) {
    %c0_i32 = arith.constant 0 : i32
    %c0_i32_0 = arith.constant 0 : i32
    %c0_i32_1 = arith.constant 0 : i32
    return %c0_i32, %c0_i32_0 : i32, i32
  }
  func.func @transform_5(%arg0: i32) -> (i32, i32, i32) {
    %c0_i32 = arith.constant 0 : i32
    %c0_i32_0 = arith.constant 0 : i32
    %c0_i32_1 = arith.constant 0 : i32
    return %arg0, %c0_i32, %c0_i32_0 : i32, i32, i32
  }
}

</mosaic_0001>

<llo_original>
// kernel: tpu_custom_call.1
$region0: #{tpu_custom_call.1}
  #allocation0 [shape = 'u32[]', space=smem, size = 0x4, offset = 0x4, fixed_abs, tag = 'smem constant byte address 0x4 - core index']
  #allocation1 [shape = 'u32[144,128]{1,0:T(1,128)}', space=vmem, size = 0x12000, scoped, tag = 'internal scratch']
  %s0 = inlined_call_operand.hbm [shape: f32[8,64,256], index: 0, kind: input, shape index: {}]
  %s1 = inlined_call_operand.vmem [shape: f32[64,32], index: 1, kind: input, shape index: {}]
  %s2 = inlined_call_operand.vmem [shape: f32[1,32], index: 2, kind: input, shape index: {}]
  %s3 = inlined_call_operand.vmem [shape: f32[64,32], index: 3, kind: input, shape index: {}]
  %s4 = inlined_call_operand.vmem [shape: f32[64,1], index: 4, kind: input, shape index: {}]
  %s5 = inlined_call_operand.hbm [shape: f32[8,64,256], index: 5, kind: output, shape index: {}]
  %s6 = sld [smem:[#allocation0]]
  $region57: #{tpu_custom_call.1} parent=0
    _
  %s8 = ssub.s32 1, %s6
  %s9 = scalar_select 0, %s8, %s6
  $region1: #{tpu_custom_call.1} parent=0
    #allocation2 [shape = 'u8[524288]{0}', space=vmem, size = 0x80000, scoped, tag = 'input window, operand 0']
    #allocation3 [shape = 's32[2]{0}', space=sflag, size = 0x8, scoped, tag = 'scoped memory for tpu_custom_call.1']
    #allocation4 [shape = 's32[2]{0}', space=sflag, size = 0x8, scoped, tag = 'scoped memory for tpu_custom_call.1']
    #allocation5 [shape = 'u8[524288]{0}', space=vmem, size = 0x80000, scoped, tag = 'output window, operand 0']
    %10 = vsyncpa [#allocation3], 0
    %s11 = scalar_lea.sflag [#allocation3], 1
    %12 = vsyncpa %s11, 0
    %13 = vsyncpa [#allocation4], 0
    %s14 = scalar_lea.sflag [#allocation4], 1
    %15 = vsyncpa %s14, 0
    loop: start=0, step=1, limit=4
    $region2: #{tpu_custom_call.1} parent=1 // loop_pre_header
      _
    $region3: #{tpu_custom_call.1} parent=1 // loop_header
      %s17 = sphi 0, %s21
      %p18 = scmp.ge.s32.totalorder %s17, 4
      %s27 = sphi 0, %s29
      %s30 = sphi 0, %s27
      %s31 = sphi 0, %s30
      %s47 = sphi 0, %s31
      %s51 = sphi 0, %s51
      %s53 = sphi 0, %s51
      %s54 = sphi 0, %s53
      %s68 = sphi 0, %s54
      %s72 = sphi 0, %s72
      %s74 = sphi 0, %s72
      %s75 = sphi 0, %s74
      %s89 = sphi 0, %s75
      %s93 = sphi 0, %s93
      %s95 = sphi 0, %s93
      %s96 = sphi 0, %s95
      %s110 = sphi 0, %s96
      %s114 = sphi 0, %s114
      %s116 = sphi 0, %s114
      %s117 = sphi 0, %s116
      %s131 = sphi 0, %s117
      %s137 = sphi 0, %s139
      %s140 = sphi 0, %s137
      %s141 = sphi 0, %s140
      %s157 = sphi 0, %s141
    $region4: #{tpu_custom_call.1} parent=1 // loop_header_branch
      %20 = sbr.rel (%p18) target = $region8
    $region5: #{tpu_custom_call.1} parent=1 // loop_body
      %s22 = ssub.s32 %s17, 1
      %s23 = ssub.s32 %s17, 2
      %s24 = sadd.s32 %s17, 1
      %s25 = ssub.s32 %s17, %s24
      %p26 = scmp.eq.s32.totalorder %s25, 0
      %s28 = sadd.s32 %s27, 1
      %s29 = scalar_select %p26, %s27, %s28
      %p32 = pneg %p26
      %p33 = scmp.eq.s32.totalorder %s17, 1
      %p34 = por %p32, %p33
      %p35 = scmp.ne.s32.totalorder %s27, %s30
      %p36 = scmp.eq.s32.totalorder %s17, 0
      %p37 = por %p35, %p36
      %p38 = scmp.ne.s32.totalorder %s27, %s30
      %p39 = scmp.eq.s32.totalorder %s22, 1
      %p40 = por %p38, %p39
      %p41 = scmp.ne.s32.totalorder %s30, %s31
      %p42 = scmp.eq.s32.totalorder %s22, 0
      %p43 = por %p41, %p42
      %p44 = scmp.ne.s32.totalorder %s30, %s31
      %p45 = scmp.eq.s32.totalorder %s23, 1
      %p46 = por %p44, %p45
      %p48 = scmp.ne.s32.totalorder %s31, %s47
      %p49 = scmp.eq.s32.totalorder %s23, 0
      %p50 = por %p48, %p49
      %s52 = sadd.s32 %s51, 1
      %p55 = scmp.eq.s32.totalorder %s17, 1
      %p56 = scmp.ne.s32.totalorder %s51, %s53
      %p57 = scmp.eq.s32.totalorder %s17, 0
      %p58 = por %p56, %p57
      %p59 = scmp.ne.s32.totalorder %s51, %s53
      %p60 = scmp.eq.s32.totalorder %s22, 1
      %p61 = por %p59, %p60
      %p62 = scmp.ne.s32.totalorder %s53, %s54
      %p63 = scmp.eq.s32.totalorder %s22, 0
      %p64 = por %p62, %p63
      %p65 = scmp.ne.s32.totalorder %s53, %s54
      %p66 = scmp.eq.s32.totalorder %s23, 1
      %p67 = por %p65, %p66
      %p69 = scmp.ne.s32.totalorder %s54, %s68
      %p70 = scmp.eq.s32.totalorder %s23, 0
      %p71 = por %p69, %p70
      %s73 = sadd.s32 %s72, 1
      %p76 = scmp.eq.s32.totalorder %s17, 1
      %p77 = scmp.ne.s32.totalorder %s72, %s74
      %p78 = scmp.eq.s32.totalorder %s17, 0
      %p79 = por %p77, %p78
      %p80 = scmp.ne.s32.totalorder %s72, %s74
      %p81 = scmp.eq.s32.totalorder %s22, 1
      %p82 = por %p80, %p81
      %p83 = scmp.ne.s32.totalorder %s74, %s75
      %p84 = scmp.eq.s32.totalorder %s22, 0
      %p85 = por %p83, %p84
      %p86 = scmp.ne.s32.totalorder %s74, %s75
      %p87 = scmp.eq.s32.totalorder %s23, 1
      %p88 = por %p86, %p87
      %p90 = scmp.ne.s32.totalorder %s75, %s89
      %p91 = scmp.eq.s32.totalorder %s23, 0
      %p92 = por %p90, %p91
      %s94 = sadd.s32 %s93, 1
      %p97 = scmp.eq.s32.totalorder %s17, 1
      %p98 = scmp.ne.s32.totalorder %s93, %s95
      %p99 = scmp.eq.s32.totalorder %s17, 0
      %p100 = por %p98, %p99
      %p101 = scmp.ne.s32.totalorder %s93, %s95
      %p102 = scmp.eq.s32.totalorder %s22, 1
      %p103 = por %p101, %p102
      %p104 = scmp.ne.s32.totalorder %s95, %s96
      %p105 = scmp.eq.s32.totalorder %s22, 0
      %p106 = por %p104, %p105
      %p107 = scmp.ne.s32.totalorder %s95, %s96
      %p108 = scmp.eq.s32.totalorder %s23, 1
      %p109 = por %p107, %p108
      %p111 = scmp.ne.s32.totalorder %s96, %s110
      %p112 = scmp.eq.s32.totalorder %s23, 0
      %p113 = por %p111, %p112
      %s115 = sadd.s32 %s114, 1
      %p118 = scmp.eq.s32.totalorder %s17, 1
      %p119 = scmp.ne.s32.totalorder %s114, %s116
      %p120 = scmp.eq.s32.totalorder %s17, 0
      %p121 = por %p119, %p120
      %p122 = scmp.ne.s32.totalorder %s114, %s116
      %p123 = scmp.eq.s32.totalorder %s22, 1
      %p124 = por %p122, %p123
      %p125 = scmp.ne.s32.totalorder %s116, %s117
      %p126 = scmp.eq.s32.totalorder %s22, 0
      %p127 = por %p125, %p126
      %p128 = scmp.ne.s32.totalorder %s116, %s117
      %p129 = scmp.eq.s32.totalorder %s23, 1
      %p130 = por %p128, %p129
      %p132 = scmp.ne.s32.totalorder %s117, %s131
      %p133 = scmp.eq.s32.totalorder %s23, 0
      %p134 = por %p132, %p133
      %s135 = ssub.s32 %s17, %s24
      %p136 = scmp.eq.s32.totalorder %s135, 0
      %s138 = sadd.s32 %s137, 1
      %s139 = scalar_select %p136, %s137, %s138
      %p142 = pneg %p136
      %p143 = scmp.eq.s32.totalorder %s17, 1
      %p144 = por %p142, %p143
      %p145 = scmp.ne.s32.totalorder %s137, %s140
      %p146 = scmp.eq.s32.totalorder %s17, 0
      %p147 = por %p145, %p146
      %p148 = scmp.ne.s32.totalorder %s137, %s140
      %p149 = scmp.eq.s32.totalorder %s22, 1
      %p150 = por %p148, %p149
      %p151 = scmp.ne.s32.totalorder %s140, %s141
      %p152 = scmp.eq.s32.totalorder %s22, 0
      %p153 = por %p151, %p152
      %p154 = scmp.ne.s32.totalorder %s140, %s141
      %p155 = scmp.eq.s32.totalorder %s23, 1
      %p156 = por %p154, %p155
      %p158 = scmp.ne.s32.totalorder %s141, %s157
      %p159 = scmp.eq.s32.totalorder %s23, 0
      %p160 = por %p158, %p159
      %p161 = scmp.le.s32.totalorder 1, %s17
      %p162 = scmp.lt.s32.totalorder %s17, 3
      %p163 = pnand %p161, %p162
      %p164 = pneg %p163
      // Predicated region
      $region9: #{tpu_custom_call.1} parent=5 // pred_check
        _
      $region10: #{tpu_custom_call.1} parent=5 // pred_check_branch
        %166 = sbr.rel (%p163) target = $region12
      $region11: #{tpu_custom_call.1} parent=5 // pred_region
        %s167 = ssub.s32 %s17, 1
        // Predicated region
        $region13: #{tpu_custom_call.1} parent=11 // pred_check
          %p168 = pneg %p64
        $region14: #{tpu_custom_call.1} parent=11 // pred_check_branch
          %170 = sbr.rel (%p168) target = $region16
        $region15: #{tpu_custom_call.1} parent=11 // pred_region
          _
        $region16: #{tpu_custom_call.1} parent=11 // pred_fallthru
          _
        // Predicated region
        $region17: #{tpu_custom_call.1} parent=11 // pred_check
          %p171 = pneg %p85
        $region18: #{tpu_custom_call.1} parent=11 // pred_check_branch
          %173 = sbr.rel (%p171) target = $region20
        $region19: #{tpu_custom_call.1} parent=11 // pred_region
          _
        $region20: #{tpu_custom_call.1} parent=11 // pred_fallthru
          _
        // Predicated region
        $region21: #{tpu_custom_call.1} parent=11 // pred_check
          %p174 = pneg %p106
        $region22: #{tpu_custom_call.1} parent=11 // pred_check_branch
          %176 = sbr.rel (%p174) target = $region24
        $region23: #{tpu_custom_call.1} parent=11 // pred_region
          _
        $region24: #{tpu_custom_call.1} parent=11 // pred_fallthru
          _
        // Predicated region
        $region25: #{tpu_custom_call.1} parent=11 // pred_check
          %p177 = pneg %p127
        $region26: #{tpu_custom_call.1} parent=11 // pred_check_branch
          %179 = sbr.rel (%p177) target = $region28
        $region27: #{tpu_custom_call.1} parent=11 // pred_region
          _
        $region28: #{tpu_custom_call.1} parent=11 // pred_fallthru
          _
      $region12: #{tpu_custom_call.1} parent=5 // pred_fallthru
        _
      %p180 = scmp.lt.s32.totalorder %s17, 2
      // Predicated region
      $region29: #{tpu_custom_call.1} parent=5 // pred_check
        %p181 = pneg %p180
      $region30: #{tpu_custom_call.1} parent=5 // pred_check_branch
        %183 = sbr.rel (%p181) target = $region32
      $region31: #{tpu_custom_call.1} parent=5 // pred_region
        // Predicated region
        $region33: #{tpu_custom_call.1} parent=31 // pred_check
          %p184 = pneg %p37
        $region34: #{tpu_custom_call.1} parent=31 // pred_check_branch
          %186 = sbr.rel (%p184) target = $region36
        $region35: #{tpu_custom_call.1} parent=31 // pred_region
          %s187 = sand.u32 %s27, 1
          %s188 = scalar_lea.sflag [#allocation3], %s187
          %s189 = sand.u32 %s27, 1
          %s190 = smul.addr %s189, 512
          %s191 = scalar_lea.vmem [#allocation2], %s190
          %s192 = smul.u32 4, %s17
          %s194 = ssub.s32 8192, 8192
          %195 = vsyncadd %s188, %s194
          %s196 = smul.addr %s192, 16
          %s197 = smul.addr %s196, 128
          %s198 = scalar_lea.hbm %s0, %s197
          %s199 = sshll.u32 %s191, 4
          %s200 = int_to_ptr.vmem [resolvable:$true] %s199
          %205 = dma.hbm_to_vmem [thread:$0]  %s198, 8192, %s200, %s188, 256, 256, 16
        $region36: #{tpu_custom_call.1} parent=31 // pred_fallthru
          _
      $region32: #{tpu_custom_call.1} parent=5 // pred_fallthru
        _
      %p206 = scmp.le.s32.totalorder 1, %s17
      %p207 = scmp.lt.s32.totalorder %s17, 3
      %p208 = pnand %p206, %p207
      %p209 = pneg %p208
      // Predicated region
      $region37: #{tpu_custom_call.1} parent=5 // pred_check
        _
      $region38: #{tpu_custom_call.1} parent=5 // pred_check_branch
        %211 = sbr.rel (%p208) target = $region40
      $region39: #{tpu_custom_call.1} parent=5 // pred_region
        %s212 = ssub.s32 %s17, 1
        %s213 = sand.u32 %s30, 1
        %s214 = scalar_lea.sflag [#allocation3], %s213
        %s215 = sand.u32 %s30, 1
        %s216 = smul.addr %s215, 512
        %s217 = scalar_lea.vmem [#allocation2], %s216
        // Predicated region
        $region41: #{tpu_custom_call.1} parent=39 // pred_check
          %p218 = pneg %p43
        $region42: #{tpu_custom_call.1} parent=39 // pred_check_branch
          %220 = sbr.rel (%p218) target = $region44
        $region43: #{tpu_custom_call.1} parent=39 // pred_region
          %221 = dma.done %s214, 8192
        $region44: #{tpu_custom_call.1} parent=39 // pred_fallthru
          _
        %s222 = sand.u32 %s30, 1
        %s223 = scalar_lea.sflag [#allocation3], %s222
        %s224 = sand.u32 %s30, 1
        %s225 = smul.addr %s224, 512
        %s226 = scalar_lea.vmem [#allocation2], %s225
        %p227 = pneg %p43
        %p228 = pneg %p40
        %p229 = pneg %p64
        %p230 = pneg %p61
        %p231 = pneg %p85
        %p232 = pneg %p82
        %p233 = pneg %p106
        %p234 = pneg %p103
        %p235 = pneg %p127
        %p236 = pneg %p124
        %p237 = pneg %p153
        %p238 = pneg %p150
        %s239 = sand.u32 %s140, 1
        %s240 = scalar_lea.sflag [#allocation4], %s239
        %s241 = sand.u32 %s140, 1
        %s242 = smul.addr %s241, 512
        %s243 = scalar_lea.vmem [#allocation5], %s242
        %s244 = smul.u32 4, %s22
        %s245 = smul.u32 4, %s22
        %v246 = vld [vmem:[%s1] sm:$0xff]
        %v247 = vld [vmem:[%s1 + $0x8] sm:$0xff]
        %v248 = vld [vmem:[%s1 + $0x10] sm:$0xff]
        %v249 = vld [vmem:[%s1 + $0x18] sm:$0xff]
        %v250 = vld [vmem:[%s1 + $0x20] sm:$0xff]
        %v251 = vld [vmem:[%s1 + $0x28] sm:$0xff]
        %v252 = vld [vmem:[%s1 + $0x30] sm:$0xff]
        %v253 = vld [vmem:[%s1 + $0x38] sm:$0xff]
        %v254 = vld [vmem:[%s2] sm:$0x1]
        %v255 = vld [vmem:[%s3] sm:$0xff]
        %v256 = vld [vmem:[%s3 + $0x8] sm:$0xff]
        %v257 = vld [vmem:[%s3 + $0x10] sm:$0xff]
        %v258 = vld [vmem:[%s3 + $0x18] sm:$0xff]
        %v259 = vld [vmem:[%s3 + $0x20] sm:$0xff]
        %v260 = vld [vmem:[%s3 + $0x28] sm:$0xff]
        %v261 = vld [vmem:[%s3 + $0x30] sm:$0xff]
        %v262 = vld [vmem:[%s3 + $0x38] sm:$0xff]
        %v263 = vld [vmem:[%s4] sm:$0xff]
        %v264 = vld [vmem:[%s4 + $0x8] sm:$0xff]
        %v265 = vld [vmem:[%s4 + $0x10] sm:$0xff]
        %v266 = vld [vmem:[%s4 + $0x18] sm:$0xff]
        %v267 = vld [vmem:[%s4 + $0x20] sm:$0xff]
        %v268 = vld [vmem:[%s4 + $0x28] sm:$0xff]
        %v269 = vld [vmem:[%s4 + $0x30] sm:$0xff]
        %v270 = vld [vmem:[%s4 + $0x38] sm:$0xff]
        %v271 = vld [vmem:[%s217] sm:$0xff]
        %v272 = vld [vmem:[%s217 + $0x8] sm:$0xff]
        %v273 = vld [vmem:[%s217 + $0x10] sm:$0xff]
        %v274 = vld [vmem:[%s217 + $0x18] sm:$0xff]
        %v275 = vld [vmem:[%s217 + $0x20] sm:$0xff]
        %v276 = vld [vmem:[%s217 + $0x28] sm:$0xff]
        %v277 = vld [vmem:[%s217 + $0x30] sm:$0xff]
        %v278 = vld [vmem:[%s217 + $0x38] sm:$0xff]
        %v279 = vld [vmem:[%s217 + $0x40] sm:$0xff]
        %v280 = vld [vmem:[%s217 + $0x48] sm:$0xff]
        %v281 = vld [vmem:[%s217 + $0x50] sm:$0xff]
        %v282 = vld [vmem:[%s217 + $0x58] sm:$0xff]
        %v283 = vld [vmem:[%s217 + $0x60] sm:$0xff]
        %v284 = vld [vmem:[%s217 + $0x68] sm:$0xff]
        %v285 = vld [vmem:[%s217 + $0x70] sm:$0xff]
        %v286 = vld [vmem:[%s217 + $0x78] sm:$0xff]
        %v287 = vadd.f32 %v271, %v272
        %288 = vadd.xlane.f32.xlu0 %v287
        %v289 = vpop.xlane.xlu0 %288
        %v290 = vadd.f32 %v273, %v274
        %291 = vadd.xlane.f32.xlu0 %v290
        %v292 = vpop.xlane.xlu0 %291
        %v293 = vadd.f32 %v275, %v276
        %294 = vadd.xlane.f32.xlu0 %v293
        %v295 = vpop.xlane.xlu0 %294
        %v296 = vadd.f32 %v277, %v278
        %297 = vadd.xlane.f32.xlu0 %v296
        %v298 = vpop.xlane.xlu0 %297
        %v299 = vadd.f32 %v279, %v280
        %300 = vadd.xlane.f32.xlu0 %v299
        %v301 = vpop.xlane.xlu0 %300
        %v302 = vadd.f32 %v281, %v282
        %303 = vadd.xlane.f32.xlu0 %v302
        %v304 = vpop.xlane.xlu0 %303
        %v305 = vadd.f32 %v283, %v284
        %306 = vadd.xlane.f32.xlu0 %v305
        %v307 = vpop.xlane.xlu0 %306
        %v308 = vadd.f32 %v285, %v286
        %309 = vadd.xlane.f32.xlu0 %v308
        %v310 = vpop.xlane.xlu0 %309
        %v311 = vmul.f32 %v289, 0.00390625
        %v312 = vmul.f32 %v292, 0.00390625
        %v313 = vmul.f32 %v295, 0.00390625
        %v314 = vmul.f32 %v298, 0.00390625
        %v315 = vmul.f32 %v301, 0.00390625
        %v316 = vmul.f32 %v304, 0.00390625
        %v317 = vmul.f32 %v307, 0.00390625
        %v318 = vmul.f32 %v310, 0.00390625
        %v319 = vmul.f32 %v246, %v311
        %v320 = vmul.f32 %v247, %v312
        %v321 = vmul.f32 %v248, %v313
        %v322 = vmul.f32 %v249, %v314
        %v323 = vmul.f32 %v250, %v315
        %v324 = vmul.f32 %v251, %v316
        %v325 = vmul.f32 %v252, %v317
        %v326 = vmul.f32 %v253, %v318
        %vm327 = vcmask 261120
        %v328 = vsel %vm327, %v319, 0.0
        %v329 = vsel %vm327, %v320, 0.0
        %v330 = vadd.f32 %v328, %v329
        %v331 = vsel %vm327, %v321, 0.0
        %v332 = vadd.f32 %v330, %v331
        %v333 = vsel %vm327, %v322, 0.0
        %v334 = vadd.f32 %v332, %v333
        %v335 = vsel %vm327, %v323, 0.0
        %v336 = vadd.f32 %v334, %v335
        %v337 = vsel %vm327, %v324, 0.0
        %v338 = vadd.f32 %v336, %v337
        %v339 = vsel %vm327, %v325, 0.0
        %v340 = vadd.f32 %v338, %v339
        %v341 = vsel %vm327, %v326, 0.0
        %v342 = vadd.f32 %v340, %v341
        %v343 = vrot.slane %v342, 4
        %v344 = vadd.f32 %v342, %v343
        %v345 = vrot.slane %v344, 2
        %v346 = vadd.f32 %v344, %v345
        %v347 = vrot.slane %v346, 1
        %v348 = vadd.f32 %v346, %v347
        %v349 = vadd.f32 %v348, %v254
        %v350 = vmax.f32 %v349, 0.0
        %v351 = vlaneseq
        %v352 = vshrl.u32 %v351, 7
        %v353 = vsub.s32 0, %v352
        %v354 = vrot.slane %v350, %v353
        %v355 = vmul.f32 %v255, %v354
        %v356 = vmul.f32 %v256, %v354
        %v357 = vmul.f32 %v257, %v354
        %v358 = vmul.f32 %v258, %v354
        %v359 = vmul.f32 %v259, %v354
        %v360 = vmul.f32 %v260, %v354
        %v361 = vmul.f32 %v261, %v354
        %v362 = vmul.f32 %v262, %v354
        %v363 = vsel %vm327, %v355, 0.0
        %364 = vadd.xlane.f32.xlu0 %v363
        %v365 = vpop.xlane.xlu0 %364
        %v366 = vsel %vm327, %v356, 0.0
        %367 = vadd.xlane.f32.xlu0 %v366
        %v368 = vpop.xlane.xlu0 %367
        %v369 = vsel %vm327, %v357, 0.0
        %370 = vadd.xlane.f32.xlu0 %v369
        %v371 = vpop.xlane.xlu0 %370
        %v372 = vsel %vm327, %v358, 0.0
        %373 = vadd.xlane.f32.xlu0 %v372
        %v374 = vpop.xlane.xlu0 %373
        %v375 = vsel %vm327, %v359, 0.0
        %376 = vadd.xlane.f32.xlu0 %v375
        %v377 = vpop.xlane.xlu0 %376
        %v378 = vsel %vm327, %v360, 0.0
        %379 = vadd.xlane.f32.xlu0 %v378
        %v380 = vpop.xlane.xlu0 %379
        %v381 = vsel %vm327, %v361, 0.0
        %382 = vadd.xlane.f32.xlu0 %v381
        %v383 = vpop.xlane.xlu0 %382
        %v384 = vsel %vm327, %v362, 0.0
        %385 = vadd.xlane.f32.xlu0 %v384
        %v386 = vpop.xlane.xlu0 %385
        %v387 = vadd.f32 %v365, %v263
        %v388 = vadd.f32 %v368, %v264
        %v389 = vadd.f32 %v371, %v265
        %v390 = vadd.f32 %v374, %v266
        %v391 = vadd.f32 %v377, %v267
        %v392 = vadd.f32 %v380, %v268
        %v393 = vadd.f32 %v383, %v269
        %v394 = vadd.f32 %v386, %v270
        %v395 = vxor.u32 %v387, 2147483648
        %v396 = vxor.u32 %v388, 2147483648
        %v397 = vxor.u32 %v389, 2147483648
        %v398 = vxor.u32 %v390, 2147483648
        %v399 = vxor.u32 %v391, 2147483648
        %v400 = vxor.u32 %v392, 2147483648
        %v401 = vxor.u32 %v393, 2147483648
        %v402 = vxor.u32 %v394, 2147483648
        %v403 = vmul.f32 %v395, 1.442695
        %v404 = vpow.pop %v403
        %v405 = vmul.f32 %v396, 1.442695
        %v406 = vpow.pop %v405
        %v407 = vmul.f32 %v397, 1.442695
        %v408 = vpow.pop %v407
        %v409 = vmul.f32 %v398, 1.442695
        %v410 = vpow.pop %v409
        %v411 = vmul.f32 %v399, 1.442695
        %v412 = vpow.pop %v411
        %v413 = vmul.f32 %v400, 1.442695
        %v414 = vpow.pop %v413
        %v415 = vmul.f32 %v401, 1.442695
        %v416 = vpow.pop %v415
        %v417 = vmul.f32 %v402, 1.442695
        %v418 = vpow.pop %v417
        %v419 = vadd.f32 %v404, 1.0
        %v420 = vadd.f32 %v406, 1.0
        %v421 = vadd.f32 %v408, 1.0
        %v422 = vadd.f32 %v410, 1.0
        %v423 = vadd.f32 %v412, 1.0
        %v424 = vadd.f32 %v414, 1.0
        %v425 = vadd.f32 %v416, 1.0
        %v426 = vadd.f32 %v418, 1.0
        %v427 = vrcp.pop %v419
        %v428 = vmul.f32 1.0, %v427
        %v429 = vrcp.pop %v420
        %v430 = vmul.f32 1.0, %v429
        %v431 = vrcp.pop %v421
        %v432 = vmul.f32 1.0, %v431
        %v433 = vrcp.pop %v422
        %v434 = vmul.f32 1.0, %v433
        %v435 = vrcp.pop %v423
        %v436 = vmul.f32 1.0, %v435
        %v437 = vrcp.pop %v424
        %v438 = vmul.f32 1.0, %v437
        %v439 = vrcp.pop %v425
        %v440 = vmul.f32 1.0, %v439
        %v441 = vrcp.pop %v426
        %v442 = vmul.f32 1.0, %v441
        %v443 = vmul.f32 %v428, 2.0
        %v444 = vmul.f32 %v430, 2.0
        %v445 = vmul.f32 %v432, 2.0
        %v446 = vmul.f32 %v434, 2.0
        %v447 = vmul.f32 %v436, 2.0
        %v448 = vmul.f32 %v438, 2.0
        %v449 = vmul.f32 %v440, 2.0
        %v450 = vmul.f32 %v442, 2.0
        %452 = vset.pattern.permute.xlu0 0
        %453 = vperm.xlu0 %452, %v443
        %v454 = vpop.permute.xlu0 %453
        %457 = vset.pattern.permute.xlu0 0
        %458 = vperm.xlu0 %457, %v444
        %v459 = vpop.permute.xlu0 %458
        %462 = vset.pattern.permute.xlu0 0
        %463 = vperm.xlu0 %462, %v445
        %v464 = vpop.permute.xlu0 %463
        %467 = vset.pattern.permute.xlu0 0
        %468 = vperm.xlu0 %467, %v446
        %v469 = vpop.permute.xlu0 %468
        %472 = vset.pattern.permute.xlu0 0
        %473 = vperm.xlu0 %472, %v447
        %v474 = vpop.permute.xlu0 %473
        %477 = vset.pattern.permute.xlu0 0
        %478 = vperm.xlu0 %477, %v448
        %v479 = vpop.permute.xlu0 %478
        %482 = vset.pattern.permute.xlu0 0
        %483 = vperm.xlu0 %482, %v449
        %v484 = vpop.permute.xlu0 %483
        %487 = vset.pattern.permute.xlu0 0
        %488 = vperm.xlu0 %487, %v450
        %v489 = vpop.permute.xlu0 %488
        %v491 = vmul.f32 %v271, %v454
        %v492 = vmul.f32 %v272, %v454
        %v493 = vmul.f32 %v273, %v459
        %v494 = vmul.f32 %v274, %v459
        %v495 = vmul.f32 %v275, %v464
        %v496 = vmul.f32 %v276, %v464
        %v497 = vmul.f32 %v277, %v469
        %v498 = vmul.f32 %v278, %v469
        %v499 = vmul.f32 %v279, %v474
        %v500 = vmul.f32 %v280, %v474
        %v501 = vmul.f32 %v281, %v479
        %v502 = vmul.f32 %v282, %v479
        %v503 = vmul.f32 %v283, %v484
        %v504 = vmul.f32 %v284, %v484
        %v505 = vmul.f32 %v285, %v489
        %v506 = vmul.f32 %v286, %v489
        %507 = vst [vmem:[%s243] sm:$0xff] %v491
        %508 = vst [vmem:[%s243 + $0x8] sm:$0xff] %v492
        %509 = vst [vmem:[%s243 + $0x10] sm:$0xff] %v493
        %510 = vst [vmem:[%s243 + $0x18] sm:$0xff] %v494
        %511 = vst [vmem:[%s243 + $0x20] sm:$0xff] %v495
        %512 = vst [vmem:[%s243 + $0x28] sm:$0xff] %v496
        %513 = vst [vmem:[%s243 + $0x30] sm:$0xff] %v497
        %514 = vst [vmem:[%s243 + $0x38] sm:$0xff] %v498
        %515 = vst [vmem:[%s243 + $0x40] sm:$0xff] %v499
        %516 = vst [vmem:[%s243 + $0x48] sm:$0xff] %v500
        %517 = vst [vmem:[%s243 + $0x50] sm:$0xff] %v501
        %518 = vst [vmem:[%s243 + $0x58] sm:$0xff] %v502
        %519 = vst [vmem:[%s243 + $0x60] sm:$0xff] %v503
        %520 = vst [vmem:[%s243 + $0x68] sm:$0xff] %v504
        %521 = vst [vmem:[%s243 + $0x70] sm:$0xff] %v505
        %522 = vst [vmem:[%s243 + $0x78] sm:$0xff] %v506
        %s523 = scalar_lea.vmem %s217, 128 [#allocation2]
        %v524 = vld [vmem:[%s523] sm:$0xff]
        %v525 = vld [vmem:[%s523 + $0x8] sm:$0xff]
        %v526 = vld [vmem:[%s523 + $0x10] sm:$0xff]
        %v527 = vld [vmem:[%s523 + $0x18] sm:$0xff]
        %v528 = vld [vmem:[%s523 + $0x20] sm:$0xff]
        %v529 = vld [vmem:[%s523 + $0x28] sm:$0xff]
        %v530 = vld [vmem:[%s523 + $0x30] sm:$0xff]
        %v531 = vld [vmem:[%s523 + $0x38] sm:$0xff]
        %v532 = vld [vmem:[%s523 + $0x40] sm:$0xff]
        %v533 = vld [vmem:[%s523 + $0x48] sm:$0xff]
        %v534 = vld [vmem:[%s523 + $0x50] sm:$0xff]
        %v535 = vld [vmem:[%s523 + $0x58] sm:$0xff]
        %v536 = vld [vmem:[%s523 + $0x60] sm:$0xff]
        %v537 = vld [vmem:[%s523 + $0x68] sm:$0xff]
        %v538 = vld [vmem:[%s523 + $0x70] sm:$0xff]
        %v539 = vld [vmem:[%s523 + $0x78] sm:$0xff]
        %v540 = vadd.f32 %v524, %v525
        %541 = vadd.xlane.f32.xlu0 %v540
        %v542 = vpop.xlane.xlu0 %541
        %v543 = vadd.f32 %v526, %v527
        %544 = vadd.xlane.f32.xlu0 %v543
        %v545 = vpop.xlane.xlu0 %544
        %v546 = vadd.f32 %v528, %v529
        %547 = vadd.xlane.f32.xlu0 %v546
        %v548 = vpop.xlane.xlu0 %547
        %v549 = vadd.f32 %v530, %v531
        %550 = vadd.xlane.f32.xlu0 %v549
        %v551 = vpop.xlane.xlu0 %550
        %v552 = vadd.f32 %v532, %v533
        %553 = vadd.xlane.f32.xlu0 %v552
        %v554 = vpop.xlane.xlu0 %553
        %v555 = vadd.f32 %v534, %v535
        %556 = vadd.xlane.f32.xlu0 %v555
        %v557 = vpop.xlane.xlu0 %556
        %v558 = vadd.f32 %v536, %v537
        %559 = vadd.xlane.f32.xlu0 %v558
        %v560 = vpop.xlane.xlu0 %559
        %v561 = vadd.f32 %v538, %v539
        %562 = vadd.xlane.f32.xlu0 %v561
        %v563 = vpop.xlane.xlu0 %562
        %v564 = vmul.f32 %v542, 0.00390625
        %v565 = vmul.f32 %v545, 0.00390625
        %v566 = vmul.f32 %v548, 0.00390625
        %v567 = vmul.f32 %v551, 0.00390625
        %v568 = vmul.f32 %v554, 0.00390625
        %v569 = vmul.f32 %v557, 0.00390625
        %v570 = vmul.f32 %v560, 0.00390625
        %v571 = vmul.f32 %v563, 0.00390625
        %v572 = vmul.f32 %v246, %v564
        %v573 = vmul.f32 %v247, %v565
        %v574 = vmul.f32 %v248, %v566
        %v575 = vmul.f32 %v249, %v567
        %v576 = vmul.f32 %v250, %v568
        %v577 = vmul.f32 %v251, %v569
        %v578 = vmul.f32 %v252, %v570
        %v579 = vmul.f32 %v253, %v571
        %v580 = vsel %vm327, %v572, 0.0
        %v581 = vsel %vm327, %v573, 0.0
        %v582 = vadd.f32 %v580, %v581
        %v583 = vsel %vm327, %v574, 0.0
        %v584 = vadd.f32 %v582, %v583
        %v585 = vsel %vm327, %v575, 0.0
        %v586 = vadd.f32 %v584, %v585
        %v587 = vsel %vm327, %v576, 0.0
        %v588 = vadd.f32 %v586, %v587
        %v589 = vsel %vm327, %v577, 0.0
        %v590 = vadd.f32 %v588, %v589
        %v591 = vsel %vm327, %v578, 0.0
        %v592 = vadd.f32 %v590, %v591
        %v593 = vsel %vm327, %v579, 0.0
        %v594 = vadd.f32 %v592, %v593
        %v595 = vrot.slane %v594, 4
        %v596 = vadd.f32 %v594, %v595
        %v597 = vrot.slane %v596, 2
        %v598 = vadd.f32 %v596, %v597
        %v599 = vrot.slane %v598, 1
        %v600 = vadd.f32 %v598, %v599
        %v601 = vadd.f32 %v600, %v254
        %v602 = vmax.f32 %v601, 0.0
        %v603 = vlaneseq
        %v604 = vshrl.u32 %v603, 7
        %v605 = vsub.s32 0, %v604
        %v606 = vrot.slane %v602, %v605
        %v607 = vmul.f32 %v255, %v606
        %v608 = vmul.f32 %v256, %v606
        %v609 = vmul.f32 %v257, %v606
        %v610 = vmul.f32 %v258, %v606
        %v611 = vmul.f32 %v259, %v606
        %v612 = vmul.f32 %v260, %v606
        %v613 = vmul.f32 %v261, %v606
        %v614 = vmul.f32 %v262, %v606
        %v615 = vsel %vm327, %v607, 0.0
        %616 = vadd.xlane.f32.xlu0 %v615
        %v617 = vpop.xlane.xlu0 %616
        %v618 = vsel %vm327, %v608, 0.0
        %619 = vadd.xlane.f32.xlu0 %v618
        %v620 = vpop.xlane.xlu0 %619
        %v621 = vsel %vm327, %v609, 0.0
        %622 = vadd.xlane.f32.xlu0 %v621
        %v623 = vpop.xlane.xlu0 %622
        %v624 = vsel %vm327, %v610, 0.0
        %625 = vadd.xlane.f32.xlu0 %v624
        %v626 = vpop.xlane.xlu0 %625
        %v627 = vsel %vm327, %v611, 0.0
        %628 = vadd.xlane.f32.xlu0 %v627
        %v629 = vpop.xlane.xlu0 %628
        %v630 = vsel %vm327, %v612, 0.0
        %631 = vadd.xlane.f32.xlu0 %v630
        %v632 = vpop.xlane.xlu0 %631
        %v633 = vsel %vm327, %v613, 0.0
        %634 = vadd.xlane.f32.xlu0 %v633
        %v635 = vpop.xlane.xlu0 %634
        %v636 = vsel %vm327, %v614, 0.0
        %637 = vadd.xlane.f32.xlu0 %v636
        %v638 = vpop.xlane.xlu0 %637
        %v639 = vadd.f32 %v617, %v263
        %v640 = vadd.f32 %v620, %v264
        %v641 = vadd.f32 %v623, %v265
        %v642 = vadd.f32 %v626, %v266
        %v643 = vadd.f32 %v629, %v267
        %v644 = vadd.f32 %v632, %v268
        %v645 = vadd.f32 %v635, %v269
        %v646 = vadd.f32 %v638, %v270
        %v647 = vxor.u32 %v639, 2147483648
        %v648 = vxor.u32 %v640, 2147483648
        %v649 = vxor.u32 %v641, 2147483648
        %v650 = vxor.u32 %v642, 2147483648
        %v651 = vxor.u32 %v643, 2147483648
        %v652 = vxor.u32 %v644, 2147483648
        %v653 = vxor.u32 %v645, 2147483648
        %v654 = vxor.u32 %v646, 2147483648
        %v655 = vmul.f32 %v647, 1.442695
        %v656 = vpow.pop %v655
        %v657 = vmul.f32 %v648, 1.442695
        %v658 = vpow.pop %v657
        %v659 = vmul.f32 %v649, 1.442695
        %v660 = vpow.pop %v659
        %v661 = vmul.f32 %v650, 1.442695
        %v662 = vpow.pop %v661
        %v663 = vmul.f32 %v651, 1.442695
        %v664 = vpow.pop %v663
        %v665 = vmul.f32 %v652, 1.442695
        %v666 = vpow.pop %v665
        %v667 = vmul.f32 %v653, 1.442695
        %v668 = vpow.pop %v667
        %v669 = vmul.f32 %v654, 1.442695
        %v670 = vpow.pop %v669
        %v671 = vadd.f32 %v656, 1.0
        %v672 = vadd.f32 %v658, 1.0
        %v673 = vadd.f32 %v660, 1.0
        %v674 = vadd.f32 %v662, 1.0
        %v675 = vadd.f32 %v664, 1.0
        %v676 = vadd.f32 %v666, 1.0
        %v677 = vadd.f32 %v668, 1.0
        %v678 = vadd.f32 %v670, 1.0
        %v679 = vrcp.pop %v671
        %v680 = vmul.f32 1.0, %v679
        %v681 = vrcp.pop %v672
        %v682 = vmul.f32 1.0, %v681
        %v683 = vrcp.pop %v673
        %v684 = vmul.f32 1.0, %v683
        %v685 = vrcp.pop %v674
        %v686 = vmul.f32 1.0, %v685
        %v687 = vrcp.pop %v675
        %v688 = vmul.f32 1.0, %v687
        %v689 = vrcp.pop %v676
        %v690 = vmul.f32 1.0, %v689
        %v691 = vrcp.pop %v677
        %v692 = vmul.f32 1.0, %v691
        %v693 = vrcp.pop %v678
        %v694 = vmul.f32 1.0, %v693
        %v695 = vmul.f32 %v680, 2.0
        %v696 = vmul.f32 %v682, 2.0
        %v697 = vmul.f32 %v684, 2.0
        %v698 = vmul.f32 %v686, 2.0
        %v699 = vmul.f32 %v688, 2.0
        %v700 = vmul.f32 %v690, 2.0
        %v701 = vmul.f32 %v692, 2.0
        %v702 = vmul.f32 %v694, 2.0
        %704 = vset.pattern.permute.xlu0 0
        %705 = vperm.xlu0 %704, %v695
        %v706 = vpop.permute.xlu0 %705
        %709 = vset.pattern.permute.xlu0 0
        %710 = vperm.xlu0 %709, %v696
        %v711 = vpop.permute.xlu0 %710
        %714 = vset.pattern.permute.xlu0 0
        %715 = vperm.xlu0 %714, %v697
        %v716 = vpop.permute.xlu0 %715
        %719 = vset.pattern.permute.xlu0 0
        %720 = vperm.xlu0 %719, %v698
        %v721 = vpop.permute.xlu0 %720
        %724 = vset.pattern.permute.xlu0 0
        %725 = vperm.xlu0 %724, %v699
        %v726 = vpop.permute.xlu0 %725
        %729 = vset.pattern.permute.xlu0 0
        %730 = vperm.xlu0 %729, %v700
        %v731 = vpop.permute.xlu0 %730
        %734 = vset.pattern.permute.xlu0 0
        %735 = vperm.xlu0 %734, %v701
        %v736 = vpop.permute.xlu0 %735
        %739 = vset.pattern.permute.xlu0 0
        %740 = vperm.xlu0 %739, %v702
        %v741 = vpop.permute.xlu0 %740
        %v743 = vmul.f32 %v524, %v706
        %v744 = vmul.f32 %v525, %v706
        %v745 = vmul.f32 %v526, %v711
        %v746 = vmul.f32 %v527, %v711
        %v747 = vmul.f32 %v528, %v716
        %v748 = vmul.f32 %v529, %v716
        %v749 = vmul.f32 %v530, %v721
        %v750 = vmul.f32 %v531, %v721
        %v751 = vmul.f32 %v532, %v726
        %v752 = vmul.f32 %v533, %v726
        %v753 = vmul.f32 %v534, %v731
        %v754 = vmul.f32 %v535, %v731
        %v755 = vmul.f32 %v536, %v736
        %v756 = vmul.f32 %v537, %v736
        %v757 = vmul.f32 %v538, %v741
        %v758 = vmul.f32 %v539, %v741
        %s759 = scalar_lea.vmem %s243, 128 [#allocation5]
        %760 = vst [vmem:[%s759] sm:$0xff] %v743
        %761 = vst [vmem:[%s759 + $0x8] sm:$0xff] %v744
        %762 = vst [vmem:[%s759 + $0x10] sm:$0xff] %v745
        %763 = vst [vmem:[%s759 + $0x18] sm:$0xff] %v746
        %764 = vst [vmem:[%s759 + $0x20] sm:$0xff] %v747
        %765 = vst [vmem:[%s759 + $0x28] sm:$0xff] %v748
        %766 = vst [vmem:[%s759 + $0x30] sm:$0xff] %v749
        %767 = vst [vmem:[%s759 + $0x38] sm:$0xff] %v750
        %768 = vst [vmem:[%s759 + $0x40] sm:$0xff] %v751
        %769 = vst [vmem:[%s759 + $0x48] sm:$0xff] %v752
        %770 = vst [vmem:[%s759 + $0x50] sm:$0xff] %v753
        %771 = vst [vmem:[%s759 + $0x58] sm:$0xff] %v754
        %772 = vst [vmem:[%s759 + $0x60] sm:$0xff] %v755
        %773 = vst [vmem:[%s759 + $0x68] sm:$0xff] %v756
        %774 = vst [vmem:[%s759 + $0x70] sm:$0xff] %v757
        %775 = vst [vmem:[%s759 + $0x78] sm:$0xff] %v758
        %s776 = scalar_lea.vmem %s217, 256 [#allocation2]
        %v777 = vld [vmem:[%s776] sm:$0xff]
        %v778 = vld [vmem:[%s776 + $0x8] sm:$0xff]
        %v779 = vld [vmem:[%s776 + $0x10] sm:$0xff]
        %v780 = vld [vmem:[%s776 + $0x18] sm:$0xff]
        %v781 = vld [vmem:[%s776 + $0x20] sm:$0xff]
        %v782 = vld [vmem:[%s776 + $0x28] sm:$0xff]
        %v783 = vld [vmem:[%s776 + $0x30] sm:$0xff]
        %v784 = vld [vmem:[%s776 + $0x38] sm:$0xff]
        %v785 = vld [vmem:[%s776 + $0x40] sm:$0xff]
        %v786 = vld [vmem:[%s776 + $0x48] sm:$0xff]
        %v787 = vld [vmem:[%s776 + $0x50] sm:$0xff]
        %v788 = vld [vmem:[%s776 + $0x58] sm:$0xff]
        %v789 = vld [vmem:[%s776 + $0x60] sm:$0xff]
        %v790 = vld [vmem:[%s776 + $0x68] sm:$0xff]
        %v791 = vld [vmem:[%s776 + $0x70] sm:$0xff]
        %v792 = vld [vmem:[%s776 + $0x78] sm:$0xff]
        %v793 = vadd.f32 %v777, %v778
        %794 = vadd.xlane.f32.xlu0 %v793
        %v795 = vpop.xlane.xlu0 %794
        %v796 = vadd.f32 %v779, %v780
        %797 = vadd.xlane.f32.xlu0 %v796
        %v798 = vpop.xlane.xlu0 %797
        %v799 = vadd.f32 %v781, %v782
        %800 = vadd.xlane.f32.xlu0 %v799
        %v801 = vpop.xlane.xlu0 %800
        %v802 = vadd.f32 %v783, %v784
        %803 = vadd.xlane.f32.xlu0 %v802
        %v804 = vpop.xlane.xlu0 %803
        %v805 = vadd.f32 %v785, %v786
        %806 = vadd.xlane.f32.xlu0 %v805
        %v807 = vpop.xlane.xlu0 %806
        %v808 = vadd.f32 %v787, %v788
        %809 = vadd.xlane.f32.xlu0 %v808
        %v810 = vpop.xlane.xlu0 %809
        %v811 = vadd.f32 %v789, %v790
        %812 = vadd.xlane.f32.xlu0 %v811
        %v813 = vpop.xlane.xlu0 %812
        %v814 = vadd.f32 %v791, %v792
        %815 = vadd.xlane.f32.xlu0 %v814
        %v816 = vpop.xlane.xlu0 %815
        %v817 = vmul.f32 %v795, 0.00390625
        %v818 = vmul.f32 %v798, 0.00390625
        %v819 = vmul.f32 %v801, 0.00390625
        %v820 = vmul.f32 %v804, 0.00390625
        %v821 = vmul.f32 %v807, 0.00390625
        %v822 = vmul.f32 %v810, 0.00390625
        %v823 = vmul.f32 %v813, 0.00390625
        %v824 = vmul.f32 %v816, 0.00390625
        %v825 = vmul.f32 %v246, %v817
        %v826 = vmul.f32 %v247, %v818
        %v827 = vmul.f32 %v248, %v819
        %v828 = vmul.f32 %v249, %v820
        %v829 = vmul.f32 %v250, %v821
        %v830 = vmul.f32 %v251, %v822
        %v831 = vmul.f32 %v252, %v823
        %v832 = vmul.f32 %v253, %v824
        %v833 = vsel %vm327, %v825, 0.0
        %v834 = vsel %vm327, %v826, 0.0
        %v835 = vadd.f32 %v833, %v834
        %v836 = vsel %vm327, %v827, 0.0
        %v837 = vadd.f32 %v835, %v836
        %v838 = vsel %vm327, %v828, 0.0
        %v839 = vadd.f32 %v837, %v838
        %v840 = vsel %vm327, %v829, 0.0
        %v841 = vadd.f32 %v839, %v840
        %v842 = vsel %vm327, %v830, 0.0
        %v843 = vadd.f32 %v841, %v842
        %v844 = vsel %vm327, %v831, 0.0
        %v845 = vadd.f32 %v843, %v844
        %v846 = vsel %vm327, %v832, 0.0
        %v847 = vadd.f32 %v845, %v846
        %v848 = vrot.slane %v847, 4
        %v849 = vadd.f32 %v847, %v848
        %v850 = vrot.slane %v849, 2
        %v851 = vadd.f32 %v849, %v850
        %v852 = vrot.slane %v851, 1
        %v853 = vadd.f32 %v851, %v852
        %v854 = vadd.f32 %v853, %v254
        %v855 = vmax.f32 %v854, 0.0
        %v856 = vlaneseq
        %v857 = vshrl.u32 %v856, 7
        %v858 = vsub.s32 0, %v857
        %v859 = vrot.slane %v855, %v858
        %v860 = vmul.f32 %v255, %v859
        %v861 = vmul.f32 %v256, %v859
        %v862 = vmul.f32 %v257, %v859
        %v863 = vmul.f32 %v258, %v859
        %v864 = vmul.f32 %v259, %v859
        %v865 = vmul.f32 %v260, %v859
        %v866 = vmul.f32 %v261, %v859
        %v867 = vmul.f32 %v262, %v859
        %v868 = vsel %vm327, %v860, 0.0
        %869 = vadd.xlane.f32.xlu0 %v868
        %v870 = vpop.xlane.xlu0 %869
        %v871 = vsel %vm327, %v861, 0.0
        %872 = vadd.xlane.f32.xlu0 %v871
        %v873 = vpop.xlane.xlu0 %872
        %v874 = vsel %vm327, %v862, 0.0
        %875 = vadd.xlane.f32.xlu0 %v874
        %v876 = vpop.xlane.xlu0 %875
        %v877 = vsel %vm327, %v863, 0.0
        %878 = vadd.xlane.f32.xlu0 %v877
        %v879 = vpop.xlane.xlu0 %878
        %v880 = vsel %vm327, %v864, 0.0
        %881 = vadd.xlane.f32.xlu0 %v880
        %v882 = vpop.xlane.xlu0 %881
        %v883 = vsel %vm327, %v865, 0.0
        %884 = vadd.xlane.f32.xlu0 %v883
        %v885 = vpop.xlane.xlu0 %884
        %v886 = vsel %vm327, %v866, 0.0
        %887 = vadd.xlane.f32.xlu0 %v886
        %v888 = vpop.xlane.xlu0 %887
        %v889 = vsel %vm327, %v867, 0.0
        %890 = vadd.xlane.f32.xlu0 %v889
        %v891 = vpop.xlane.xlu0 %890
        %v892 = vadd.f32 %v870, %v263
        %v893 = vadd.f32 %v873, %v264
        %v894 = vadd.f32 %v876, %v265
        %v895 = vadd.f32 %v879, %v266
        %v896 = vadd.f32 %v882, %v267
        %v897 = vadd.f32 %v885, %v268
        %v898 = vadd.f32 %v888, %v269
        %v899 = vadd.f32 %v891, %v270
        %v900 = vxor.u32 %v892, 2147483648
        %v901 = vxor.u32 %v893, 2147483648
        %v902 = vxor.u32 %v894, 2147483648
        %v903 = vxor.u32 %v895, 2147483648
        %v904 = vxor.u32 %v896, 2147483648
        %v905 = vxor.u32 %v897, 2147483648
        %v906 = vxor.u32 %v898, 2147483648
        %v907 = vxor.u32 %v899, 2147483648
        %v908 = vmul.f32 %v900, 1.442695
        %v909 = vpow.pop %v908
        %v910 = vmul.f32 %v901, 1.442695
        %v911 = vpow.pop %v910
        %v912 = vmul.f32 %v902, 1.442695
        %v913 = vpow.pop %v912
        %v914 = vmul.f32 %v903, 1.442695
        %v915 = vpow.pop %v914
        %v916 = vmul.f32 %v904, 1.442695
        %v917 = vpow.pop %v916
        %v918 = vmul.f32 %v905, 1.442695
        %v919 = vpow.pop %v918
        %v920 = vmul.f32 %v906, 1.442695
        %v921 = vpow.pop %v920
        %v922 = vmul.f32 %v907, 1.442695
        %v923 = vpow.pop %v922
        %v924 = vadd.f32 %v909, 1.0
        %v925 = vadd.f32 %v911, 1.0
        %v926 = vadd.f32 %v913, 1.0
        %v927 = vadd.f32 %v915, 1.0
        %v928 = vadd.f32 %v917, 1.0
        %v929 = vadd.f32 %v919, 1.0
        %v930 = vadd.f32 %v921, 1.0
        %v931 = vadd.f32 %v923, 1.0
        %v932 = vrcp.pop %v924
        %v933 = vmul.f32 1.0, %v932
        %v934 = vrcp.pop %v925
        %v935 = vmul.f32 1.0, %v934
        %v936 = vrcp.pop %v926
        %v937 = vmul.f32 1.0, %v936
        %v938 = vrcp.pop %v927
        %v939 = vmul.f32 1.0, %v938
        %v940 = vrcp.pop %v928
        %v941 = vmul.f32 1.0, %v940
        %v942 = vrcp.pop %v929
        %v943 = vmul.f32 1.0, %v942
        %v944 = vrcp.pop %v930
        %v945 = vmul.f32 1.0, %v944
        %v946 = vrcp.pop %v931
        %v947 = vmul.f32 1.0, %v946
        %v948 = vmul.f32 %v933, 2.0
        %v949 = vmul.f32 %v935, 2.0
        %v950 = vmul.f32 %v937, 2.0
        %v951 = vmul.f32 %v939, 2.0
        %v952 = vmul.f32 %v941, 2.0
        %v953 = vmul.f32 %v943, 2.0
        %v954 = vmul.f32 %v945, 2.0
        %v955 = vmul.f32 %v947, 2.0
        %957 = vset.pattern.permute.xlu0 0
        %958 = vperm.xlu0 %957, %v948
        %v959 = vpop.permute.xlu0 %958
        %962 = vset.pattern.permute.xlu0 0
        %963 = vperm.xlu0 %962, %v949
        %v964 = vpop.permute.xlu0 %963
        %967 = vset.pattern.permute.xlu0 0
        %968 = vperm.xlu0 %967, %v950
        %v969 = vpop.permute.xlu0 %968
        %972 = vset.pattern.permute.xlu0 0
        %973 = vperm.xlu0 %972, %v951
        %v974 = vpop.permute.xlu0 %973
        %977 = vset.pattern.permute.xlu0 0
        %978 = vperm.xlu0 %977, %v952
        %v979 = vpop.permute.xlu0 %978
        %982 = vset.pattern.permute.xlu0 0
        %983 = vperm.xlu0 %982, %v953
        %v984 = vpop.permute.xlu0 %983
        %987 = vset.pattern.permute.xlu0 0
        %988 = vperm.xlu0 %987, %v954
        %v989 = vpop.permute.xlu0 %988
        %992 = vset.pattern.permute.xlu0 0
        %993 = vperm.xlu0 %992, %v955
        %v994 = vpop.permute.xlu0 %993
        %v996 = vmul.f32 %v777, %v959
        %v997 = vmul.f32 %v778, %v959
        %v998 = vmul.f32 %v779, %v964
        %v999 = vmul.f32 %v780, %v964
        %v1000 = vmul.f32 %v781, %v969
        %v1001 = vmul.f32 %v782, %v969
        %v1002 = vmul.f32 %v783, %v974
        %v1003 = vmul.f32 %v784, %v974
        %v1004 = vmul.f32 %v785, %v979
        %v1005 = vmul.f32 %v786, %v979
        %v1006 = vmul.f32 %v787, %v984
        %v1007 = vmul.f32 %v788, %v984
        %v1008 = vmul.f32 %v789, %v989
        %v1009 = vmul.f32 %v790, %v989
        %v1010 = vmul.f32 %v791, %v994
        %v1011 = vmul.f32 %v792, %v994
        %s1012 = scalar_lea.vmem %s243, 256 [#allocation5]
        %1013 = vst [vmem:[%s1012] sm:$0xff] %v996
        %1014 = vst [vmem:[%s1012 + $0x8] sm:$0xff] %v997
        %1015 = vst [vmem:[%s1012 + $0x10] sm:$0xff] %v998
        %1016 = vst [vmem:[%s1012 + $0x18] sm:$0xff] %v999
        %1017 = vst [vmem:[%s1012 + $0x20] sm:$0xff] %v1000
        %1018 = vst [vmem:[%s1012 + $0x28] sm:$0xff] %v1001
        %1019 = vst [vmem:[%s1012 + $0x30] sm:$0xff] %v1002
        %1020 = vst [vmem:[%s1012 + $0x38] sm:$0xff] %v1003
        %1021 = vst [vmem:[%s1012 + $0x40] sm:$0xff] %v1004
        %1022 = vst [vmem:[%s1012 + $0x48] sm:$0xff] %v1005
        %1023 = vst [vmem:[%s1012 + $0x50] sm:$0xff] %v1006
        %1024 = vst [vmem:[%s1012 + $0x58] sm:$0xff] %v1007
        %1025 = vst [vmem:[%s1012 + $0x60] sm:$0xff] %v1008
        %1026 = vst [vmem:[%s1012 + $0x68] sm:$0xff] %v1009
        %1027 = vst [vmem:[%s1012 + $0x70] sm:$0xff] %v1010
        %1028 = vst [vmem:[%s1012 + $0x78] sm:$0xff] %v1011
        %s1029 = scalar_lea.vmem %s217, 384 [#allocation2]
        %v1030 = vld [vmem:[%s1029] sm:$0xff]
        %v1031 = vld [vmem:[%s1029 + $0x8] sm:$0xff]
        %v1032 = vld [vmem:[%s1029 + $0x10] sm:$0xff]
        %v1033 = vld [vmem:[%s1029 + $0x18] sm:$0xff]
        %v1034 = vld [vmem:[%s1029 + $0x20] sm:$0xff]
        %v1035 = vld [vmem:[%s1029 + $0x28] sm:$0xff]
        %v1036 = vld [vmem:[%s1029 + $0x30] sm:$0xff]
        %v1037 = vld [vmem:[%s1029 + $0x38] sm:$0xff]
        %v1038 = vld [vmem:[%s1029 + $0x40] sm:$0xff]
        %v1039 = vld [vmem:[%s1029 + $0x48] sm:$0xff]
        %v1040 = vld [vmem:[%s1029 + $0x50] sm:$0xff]
        %v1041 = vld [vmem:[%s1029 + $0x58] sm:$0xff]
        %v1042 = vld [vmem:[%s1029 + $0x60] sm:$0xff]
        %v1043 = vld [vmem:[%s1029 + $0x68] sm:$0xff]
        %v1044 = vld [vmem:[%s1029 + $0x70] sm:$0xff]
        %v1045 = vld [vmem:[%s1029 + $0x78] sm:$0xff]
        %v1046 = vadd.f32 %v1030, %v1031
        %1047 = vadd.xlane.f32.xlu0 %v1046
        %v1048 = vpop.xlane.xlu0 %1047
        %v1049 = vadd.f32 %v1032, %v1033
        %1050 = vadd.xlane.f32.xlu0 %v1049
        %v1051 = vpop.xlane.xlu0 %1050
        %v1052 = vadd.f32 %v1034, %v1035
        %1053 = vadd.xlane.f32.xlu0 %v1052
        %v1054 = vpop.xlane.xlu0 %1053
        %v1055 = vadd.f32 %v1036, %v1037
        %1056 = vadd.xlane.f32.xlu0 %v1055
        %v1057 = vpop.xlane.xlu0 %1056
        %v1058 = vadd.f32 %v1038, %v1039
        %1059 = vadd.xlane.f32.xlu0 %v1058
        %v1060 = vpop.xlane.xlu0 %1059
        %v1061 = vadd.f32 %v1040, %v1041
        %1062 = vadd.xlane.f32.xlu0 %v1061
        %v1063 = vpop.xlane.xlu0 %1062
        %v1064 = vadd.f32 %v1042, %v1043
        %1065 = vadd.xlane.f32.xlu0 %v1064
        %v1066 = vpop.xlane.xlu0 %1065
        %v1067 = vadd.f32 %v1044, %v1045
        %1068 = vadd.xlane.f32.xlu0 %v1067
        %v1069 = vpop.xlane.xlu0 %1068
        %v1070 = vmul.f32 %v1048, 0.00390625
        %v1071 = vmul.f32 %v1051, 0.00390625
        %v1072 = vmul.f32 %v1054, 0.00390625
        %v1073 = vmul.f32 %v1057, 0.00390625
        %v1074 = vmul.f32 %v1060, 0.00390625
        %v1075 = vmul.f32 %v1063, 0.00390625
        %v1076 = vmul.f32 %v1066, 0.00390625
        %v1077 = vmul.f32 %v1069, 0.00390625
        %v1078 = vmul.f32 %v246, %v1070
        %v1079 = vmul.f32 %v247, %v1071
        %v1080 = vmul.f32 %v248, %v1072
        %v1081 = vmul.f32 %v249, %v1073
        %v1082 = vmul.f32 %v250, %v1074
        %v1083 = vmul.f32 %v251, %v1075
        %v1084 = vmul.f32 %v252, %v1076
        %v1085 = vmul.f32 %v253, %v1077
        %v1086 = vsel %vm327, %v1078, 0.0
        %v1087 = vsel %vm327, %v1079, 0.0
        %v1088 = vadd.f32 %v1086, %v1087
        %v1089 = vsel %vm327, %v1080, 0.0
        %v1090 = vadd.f32 %v1088, %v1089
        %v1091 = vsel %vm327, %v1081, 0.0
        %v1092 = vadd.f32 %v1090, %v1091
        %v1093 = vsel %vm327, %v1082, 0.0
        %v1094 = vadd.f32 %v1092, %v1093
        %v1095 = vsel %vm327, %v1083, 0.0
        %v1096 = vadd.f32 %v1094, %v1095
        %v1097 = vsel %vm327, %v1084, 0.0
        %v1098 = vadd.f32 %v1096, %v1097
        %v1099 = vsel %vm327, %v1085, 0.0
        %v1100 = vadd.f32 %v1098, %v1099
        %v1101 = vrot.slane %v1100, 4
        %v1102 = vadd.f32 %v1100, %v1101
        %v1103 = vrot.slane %v1102, 2
        %v1104 = vadd.f32 %v1102, %v1103
        %v1105 = vrot.slane %v1104, 1
        %v1106 = vadd.f32 %v1104, %v1105
        %v1107 = vadd.f32 %v1106, %v254
        %v1108 = vmax.f32 %v1107, 0.0
        %v1109 = vlaneseq
        %v1110 = vshrl.u32 %v1109, 7
        %v1111 = vsub.s32 0, %v1110
        %v1112 = vrot.slane %v1108, %v1111
        %v1113 = vmul.f32 %v255, %v1112
        %v1114 = vmul.f32 %v256, %v1112
        %v1115 = vmul.f32 %v257, %v1112
        %v1116 = vmul.f32 %v258, %v1112
        %v1117 = vmul.f32 %v259, %v1112
        %v1118 = vmul.f32 %v260, %v1112
        %v1119 = vmul.f32 %v261, %v1112
        %v1120 = vmul.f32 %v262, %v1112
        %v1121 = vsel %vm327, %v1113, 0.0
        %1122 = vadd.xlane.f32.xlu0 %v1121
        %v1123 = vpop.xlane.xlu0 %1122
        %v1124 = vsel %vm327, %v1114, 0.0
        %1125 = vadd.xlane.f32.xlu0 %v1124
        %v1126 = vpop.xlane.xlu0 %1125
        %v1127 = vsel %vm327, %v1115, 0.0
        %1128 = vadd.xlane.f32.xlu0 %v1127
        %v1129 = vpop.xlane.xlu0 %1128
        %v1130 = vsel %vm327, %v1116, 0.0
        %1131 = vadd.xlane.f32.xlu0 %v1130
        %v1132 = vpop.xlane.xlu0 %1131
        %v1133 = vsel %vm327, %v1117, 0.0
        %1134 = vadd.xlane.f32.xlu0 %v1133
        %v1135 = vpop.xlane.xlu0 %1134
        %v1136 = vsel %vm327, %v1118, 0.0
        %1137 = vadd.xlane.f32.xlu0 %v1136
        %v1138 = vpop.xlane.xlu0 %1137
        %v1139 = vsel %vm327, %v1119, 0.0
        %1140 = vadd.xlane.f32.xlu0 %v1139
        %v1141 = vpop.xlane.xlu0 %1140
        %v1142 = vsel %vm327, %v1120, 0.0
        %1143 = vadd.xlane.f32.xlu0 %v1142
        %v1144 = vpop.xlane.xlu0 %1143
        %v1145 = vadd.f32 %v1123, %v263
        %v1146 = vadd.f32 %v1126, %v264
        %v1147 = vadd.f32 %v1129, %v265
        %v1148 = vadd.f32 %v1132, %v266
        %v1149 = vadd.f32 %v1135, %v267
        %v1150 = vadd.f32 %v1138, %v268
        %v1151 = vadd.f32 %v1141, %v269
        %v1152 = vadd.f32 %v1144, %v270
        %v1153 = vxor.u32 %v1145, 2147483648
        %v1154 = vxor.u32 %v1146, 2147483648
        %v1155 = vxor.u32 %v1147, 2147483648
        %v1156 = vxor.u32 %v1148, 2147483648
        %v1157 = vxor.u32 %v1149, 2147483648
        %v1158 = vxor.u32 %v1150, 2147483648
        %v1159 = vxor.u32 %v1151, 2147483648
        %v1160 = vxor.u32 %v1152, 2147483648
        %v1161 = vmul.f32 %v1153, 1.442695
        %v1162 = vpow.pop %v1161
        %v1163 = vmul.f32 %v1154, 1.442695
        %v1164 = vpow.pop %v1163
        %v1165 = vmul.f32 %v1155, 1.442695
        %v1166 = vpow.pop %v1165
        %v1167 = vmul.f32 %v1156, 1.442695
        %v1168 = vpow.pop %v1167
        %v1169 = vmul.f32 %v1157, 1.442695
        %v1170 = vpow.pop %v1169
        %v1171 = vmul.f32 %v1158, 1.442695
        %v1172 = vpow.pop %v1171
        %v1173 = vmul.f32 %v1159, 1.442695
        %v1174 = vpow.pop %v1173
        %v1175 = vmul.f32 %v1160, 1.442695
        %v1176 = vpow.pop %v1175
        %v1177 = vadd.f32 %v1162, 1.0
        %v1178 = vadd.f32 %v1164, 1.0
        %v1179 = vadd.f32 %v1166, 1.0
        %v1180 = vadd.f32 %v1168, 1.0
        %v1181 = vadd.f32 %v1170, 1.0
        %v1182 = vadd.f32 %v1172, 1.0
        %v1183 = vadd.f32 %v1174, 1.0
        %v1184 = vadd.f32 %v1176, 1.0
        %v1185 = vrcp.pop %v1177
        %v1186 = vmul.f32 1.0, %v1185
        %v1187 = vrcp.pop %v1178
        %v1188 = vmul.f32 1.0, %v1187
        %v1189 = vrcp.pop %v1179
        %v1190 = vmul.f32 1.0, %v1189
        %v1191 = vrcp.pop %v1180
        %v1192 = vmul.f32 1.0, %v1191
        %v1193 = vrcp.pop %v1181
        %v1194 = vmul.f32 1.0, %v1193
        %v1195 = vrcp.pop %v1182
        %v1196 = vmul.f32 1.0, %v1195
        %v1197 = vrcp.pop %v1183
        %v1198 = vmul.f32 1.0, %v1197
        %v1199 = vrcp.pop %v1184
        %v1200 = vmul.f32 1.0, %v1199
        %v1201 = vmul.f32 %v1186, 2.0
        %v1202 = vmul.f32 %v1188, 2.0
        %v1203 = vmul.f32 %v1190, 2.0
        %v1204 = vmul.f32 %v1192, 2.0
        %v1205 = vmul.f32 %v1194, 2.0
        %v1206 = vmul.f32 %v1196, 2.0
        %v1207 = vmul.f32 %v1198, 2.0
        %v1208 = vmul.f32 %v1200, 2.0
        %1210 = vset.pattern.permute.xlu0 0
        %1211 = vperm.xlu0 %1210, %v1201
        %v1212 = vpop.permute.xlu0 %1211
        %1215 = vset.pattern.permute.xlu0 0
        %1216 = vperm.xlu0 %1215, %v1202
        %v1217 = vpop.permute.xlu0 %1216
        %1220 = vset.pattern.permute.xlu0 0
        %1221 = vperm.xlu0 %1220, %v1203
        %v1222 = vpop.permute.xlu0 %1221
        %1225 = vset.pattern.permute.xlu0 0
        %1226 = vperm.xlu0 %1225, %v1204
        %v1227 = vpop.permute.xlu0 %1226
        %1230 = vset.pattern.permute.xlu0 0
        %1231 = vperm.xlu0 %1230, %v1205
        %v1232 = vpop.permute.xlu0 %1231
        %1235 = vset.pattern.permute.xlu0 0
        %1236 = vperm.xlu0 %1235, %v1206
        %v1237 = vpop.permute.xlu0 %1236
        %1240 = vset.pattern.permute.xlu0 0
        %1241 = vperm.xlu0 %1240, %v1207
        %v1242 = vpop.permute.xlu0 %1241
        %1245 = vset.pattern.permute.xlu0 0
        %1246 = vperm.xlu0 %1245, %v1208
        %v1247 = vpop.permute.xlu0 %1246
        %v1249 = vmul.f32 %v1030, %v1212
        %v1250 = vmul.f32 %v1031, %v1212
        %v1251 = vmul.f32 %v1032, %v1217
        %v1252 = vmul.f32 %v1033, %v1217
        %v1253 = vmul.f32 %v1034, %v1222
        %v1254 = vmul.f32 %v1035, %v1222
        %v1255 = vmul.f32 %v1036, %v1227
        %v1256 = vmul.f32 %v1037, %v1227
        %v1257 = vmul.f32 %v1038, %v1232
        %v1258 = vmul.f32 %v1039, %v1232
        %v1259 = vmul.f32 %v1040, %v1237
        %v1260 = vmul.f32 %v1041, %v1237
        %v1261 = vmul.f32 %v1042, %v1242
        %v1262 = vmul.f32 %v1043, %v1242
        %v1263 = vmul.f32 %v1044, %v1247
        %v1264 = vmul.f32 %v1045, %v1247
        %s1265 = scalar_lea.vmem %s243, 384 [#allocation5]
        %1266 = vst [vmem:[%s1265] sm:$0xff] %v1249
        %1267 = vst [vmem:[%s1265 + $0x8] sm:$0xff] %v1250
        %1268 = vst [vmem:[%s1265 + $0x10] sm:$0xff] %v1251
        %1269 = vst [vmem:[%s1265 + $0x18] sm:$0xff] %v1252
        %1270 = vst [vmem:[%s1265 + $0x20] sm:$0xff] %v1253
        %1271 = vst [vmem:[%s1265 + $0x28] sm:$0xff] %v1254
        %1272 = vst [vmem:[%s1265 + $0x30] sm:$0xff] %v1255
        %1273 = vst [vmem:[%s1265 + $0x38] sm:$0xff] %v1256
        %1274 = vst [vmem:[%s1265 + $0x40] sm:$0xff] %v1257
        %1275 = vst [vmem:[%s1265 + $0x48] sm:$0xff] %v1258
        %1276 = vst [vmem:[%s1265 + $0x50] sm:$0xff] %v1259
        %1277 = vst [vmem:[%s1265 + $0x58] sm:$0xff] %v1260
        %1278 = vst [vmem:[%s1265 + $0x60] sm:$0xff] %v1261
        %1279 = vst [vmem:[%s1265 + $0x68] sm:$0xff] %v1262
        %1280 = vst [vmem:[%s1265 + $0x70] sm:$0xff] %v1263
        %1281 = vst [vmem:[%s1265 + $0x78] sm:$0xff] %v1264
        %s1282 = sand.u32 %s140, 1
        %s1283 = scalar_lea.sflag [#allocation4], %s1282
        %s1284 = sand.u32 %s140, 1
        %s1285 = smul.addr %s1284, 512
        %s1286 = scalar_lea.vmem [#allocation5], %s1285
        // Predicated region
        $region45: #{tpu_custom_call.1} parent=39 // pred_check
          %p1287 = pneg %p150
        $region46: #{tpu_custom_call.1} parent=39 // pred_check_branch
          %1289 = sbr.rel (%p1287) target = $region48
        $region47: #{tpu_custom_call.1} parent=39 // pred_region
          %s1290 = smul.u32 4, %s22
          %s1292 = ssub.s32 8192, 8192
          %1293 = vsyncadd %s1283, %s1292
          %s1294 = smul.addr %s1290, 16
          %s1295 = smul.addr %s1294, 128
          %s1296 = scalar_lea.hbm %s5, %s1295
          %s1297 = sshll.u32 %s1286, 4
          %s1298 = int_to_ptr.vmem [resolvable:$true] %s1297
          %1303 = dma.vmem_to_hbm [thread:$0]  %s1298, 8192, %s1296, %s1283, 256, 256, 16
        $region48: #{tpu_custom_call.1} parent=39 // pred_fallthru
          _
      $region40: #{tpu_custom_call.1} parent=5 // pred_fallthru
        _
      %p1304 = scmp.le.s32.totalorder 2, %s17
      // Predicated region
      $region49: #{tpu_custom_call.1} parent=5 // pred_check
        %p1305 = pneg %p1304
      $region50: #{tpu_custom_call.1} parent=5 // pred_check_branch
        %1307 = sbr.rel (%p1305) target = $region52
      $region51: #{tpu_custom_call.1} parent=5 // pred_region
        %s1308 = ssub.s32 %s17, 2
        // Predicated region
        $region53: #{tpu_custom_call.1} parent=51 // pred_check
          %p1309 = pneg %p156
        $region54: #{tpu_custom_call.1} parent=51 // pred_check_branch
          %1311 = sbr.rel (%p1309) target = $region56
        $region55: #{tpu_custom_call.1} parent=51 // pred_region
          %s1312 = sand.u32 %s141, 1
          %s1313 = scalar_lea.sflag [#allocation4], %s1312
          %s1314 = sand.u32 %s141, 1
          %s1315 = smul.addr %s1314, 512
          %s1316 = scalar_lea.vmem [#allocation5], %s1315
          %1317 = dma.done %s1313, 8192
        $region56: #{tpu_custom_call.1} parent=51 // pred_fallthru
          _
      $region52: #{tpu_custom_call.1} parent=5 // pred_fallthru
        _
    $region6: #{tpu_custom_call.1} parent=1 // loop_footer
      %s21 = sadd.s32 1, %s17
    $region7: #{tpu_custom_call.1} parent=1 // loop_footer_branch
      %16 = sbr.rel target = $region3
    $region8: #{tpu_custom_call.1} parent=1 // loop_exit
      _
    %1318 = vsyncpa [#allocation3], 1
    %s1319 = scalar_lea.sflag [#allocation3], 1
    %1320 = vsyncpa %s1319, 1
    %1321 = vsyncpa [#allocation4], 1
    %s1322 = scalar_lea.sflag [#allocation4], 1
    %1323 = vsyncpa %s1322, 1

</llo_original>
